<compile_context>
chip_gen: v7x
topology: tpu7x:2x2x1
jax: 0.10.0
libtpu: 0.0.40
codegen_flags: <defaults>
</compile_context>

<pallas_src>
import functools

import jax
import jax.numpy as jnp
from jax.experimental import pallas as pl
from jax.experimental.pallas import tpu as pltpu


_VMEM_LIMIT_BYTES = 48 * 1024 * 1024      # explicit scoped-VMEM limit (fits v7x's 64 MiB)
_STREAM_BUDGET_BYTES = 10 * 1024 * 1024   # per-stream (double-buffered) block budget


def _pick_tile(total, bytes_per_unit, budget_bytes=_STREAM_BUDGET_BYTES, align=16):
    """Largest tile that divides `total`, is a multiple of `align` (or == total),
    and keeps the (double-buffered) block under the byte budget."""
    if total <= align or total * bytes_per_unit <= budget_bytes:
        return total
    tile = max((budget_bytes // bytes_per_unit) // align * align, align)
    tile = min(tile, total)
    while tile >= align:
        if total % tile == 0:
            return tile
        tile -= align
    return total  # fallback: keep whole (only hit for awkward non-aligned sizes)


# ----------------------------------------------------------------------------
# Phase 1: hoisted input projection  GI = sum_c x[c] @ W_ih[c] + b_ih
# ----------------------------------------------------------------------------
def _input_proj_kernel(x_ref, wih_ref, bih_ref, gi_ref):
    """One direction / one M-tile.

    x_ref:   (C, mt, Hin)  bf16   input chunks (shared across directions)
    wih_ref: (C, Hin, 3H)  bf16   this direction's packed gate weights [r|z|n]
    bih_ref: (1, 3H)       f32
    gi_ref:  (mt, 3H)      f32
    """
    acc = jnp.dot(x_ref[0], wih_ref[0], preferred_element_type=jnp.float32)
    for c in range(1, x_ref.shape[0]):  # C is 1 (layer 0) or 2 (deeper layers)
        acc = acc + jnp.dot(x_ref[c], wih_ref[c], preferred_element_type=jnp.float32)
    gi_ref[...] = acc + bih_ref[...]


def _input_projection(x_chunks, w_ih, b_ih):
    """x_chunks: (C, M, Hin) bf16; w_ih: (2, C, Hin, 3H) bf16; b_ih: (2, 1, 3H) f32.
    Returns GI: (2, M, 3H) f32."""
    C, M, Hin = x_chunks.shape
    G3 = w_ih.shape[-1]
    bytes_per_row = 2 * (C * Hin * 2 + G3 * 4)  # bf16 x block + f32 gi block, 2x buffered
    mt = _pick_tile(M, bytes_per_row)
    grid = (2, M // mt)
    return pl.pallas_call(
        _input_proj_kernel,
        out_shape=jax.ShapeDtypeStruct((2, M, G3), jnp.float32),
        grid=grid,
        in_specs=[
            pl.BlockSpec((C, mt, Hin), lambda d, m: (0, m, 0)),
            pl.BlockSpec((None, C, Hin, G3), lambda d, m: (d, 0, 0, 0)),
            pl.BlockSpec((None, 1, G3), lambda d, m: (d, 0, 0)),
        ],
        out_specs=pl.BlockSpec((None, mt, G3), lambda d, m: (d, m, 0)),
        compiler_params=pltpu.CompilerParams(
            dimension_semantics=("parallel", "parallel"),
            vmem_limit_bytes=_VMEM_LIMIT_BYTES),
    )(x_chunks, w_ih, b_ih)


# ----------------------------------------------------------------------------
# Phase 2: serial recurrence with a single packed (H, 3H) matmul per step
# ----------------------------------------------------------------------------
def _gru_recurrence_kernel(gi_ref, whh_ref, bhh_ref, y_ref, hN_ref, h_scr):
    """One (direction, batch-tile) grid point.

    gi_ref:  (S, bb, 3H) f32   precomputed x @ W_ih + b_ih
    whh_ref: (H, 3H)     bf16  packed recurrent gate weights [r|z|n]
    bhh_ref: (1, 3H)     f32
    y_ref:   (S, bb, H)  bf16  per-step hidden states (feeds next layer)
    hN_ref:  (bb, H)     f32   final hidden state of this direction
    h_scr:   (bb, H)     f32   carry
    """
    S = gi_ref.shape[0]
    H = whh_ref.shape[0]
    d = pl.program_id(0)                       # 0 = forward, 1 = backward

    h_scr[...] = jnp.zeros_like(h_scr)
    whh = whh_ref[...]                                              # (H, 3H) bf16
    bhh = jnp.broadcast_to(bhh_ref[...], (h_scr.shape[0], 3 * H))   # hoisted broadcast

    # TODO(synk): on v5e, hold the packed W_hh in MXU weight registers across
    # steps via pltpu.matmul_push_rhs / matmul_acc_lhs / matmul_pop.
    @pl.loop(0, S)
    def _step(t):
        idx = d * (S - 1) + (1 - 2 * d) * t    # t (fwd) or S-1-t (bwd)
        gi = gi_ref[idx]                       # (bb, 3H) f32
        h_prev = h_scr[...]                    # (bb, H)  f32
        gh = jnp.dot(h_prev.astype(whh.dtype), whh,
                     preferred_element_type=jnp.float32) + bhh
        r = jax.nn.sigmoid(gi[:, :H] + gh[:, :H])
        z = jax.nn.sigmoid(gi[:, H:2 * H] + gh[:, H:2 * H])
        n = jnp.tanh(gi[:, 2 * H:] + r * gh[:, 2 * H:])
        h_new = (1.0 - z) * n + z * h_prev
        h_scr[...] = h_new
        y_ref[idx] = h_new.astype(y_ref.dtype)

    hN_ref[...] = h_scr[...]


def _gru_recurrence(gi, w_hh, b_hh):
    """gi: (2, S, B, 3H) f32; w_hh: (2, H, 3H) bf16; b_hh: (2, 1, 3H) f32.
    Returns y: (2, S, B, H) bf16, hN: (2, B, H) f32."""
    _, S, B, G3 = gi.shape
    H = G3 // 3
    bytes_per_row = 2 * (S * G3 * 4 + S * H * 2 + H * 4)  # gi f32 + y bf16 + hN, 2x buffered
    bb = _pick_tile(B, bytes_per_row)
    grid = (2, B // bb)
    return pl.pallas_call(
        _gru_recurrence_kernel,
        out_shape=(jax.ShapeDtypeStruct((2, S, B, H), jnp.bfloat16),
                   jax.ShapeDtypeStruct((2, B, H), jnp.float32)),
        grid=grid,
        in_specs=[
            pl.BlockSpec((None, S, bb, G3), lambda d, b: (d, 0, b, 0)),
            pl.BlockSpec((None, H, G3), lambda d, b: (d, 0, 0)),
            pl.BlockSpec((None, 1, G3), lambda d, b: (d, 0, 0)),
        ],
        out_specs=(
            pl.BlockSpec((None, S, bb, H), lambda d, b: (d, 0, b, 0)),
            pl.BlockSpec((None, bb, H), lambda d, b: (d, b, 0)),
        ),
        scratch_shapes=[pltpu.VMEM((bb, H), jnp.float32)],
        compiler_params=pltpu.CompilerParams(
            dimension_semantics=("parallel", "parallel"),
            vmem_limit_bytes=_VMEM_LIMIT_BYTES),
    )(gi, w_hh, b_hh)


# ----------------------------------------------------------------------------
# Encoder wrapper
# ----------------------------------------------------------------------------
@jax.jit
def _encoder_forward(params, x):
    """x: (B, S, E) batch_first, like the torch module. Returns (B, 2H) f32."""
    B, S, _ = x.shape
    H = params[0]["w_hh"].shape[1]
    Bp = -(-B // 8) * 8                                  # pad batch to sublane multiple
    x_tm = jnp.transpose(x, (1, 0, 2)).astype(jnp.float32)      # (S, B, E)
    if Bp != B:
        x_tm = jnp.pad(x_tm, ((0, 0), (0, Bp - B), (0, 0)))
    chunks = x_tm.astype(jnp.bfloat16).reshape(1, S * Bp, -1)   # (1, M, E)

    hN = None
    for p in params:
        gi = _input_projection(chunks, p["w_ih"], p["b_ih"])    # (2, M, 3H) f32
        gi = gi.reshape(2, S, Bp, 3 * H)
        y, hN = _gru_recurrence(gi, p["w_hh"], p["b_hh"])       # (2,S,Bp,H), (2,Bp,H)
        chunks = y.reshape(2, S * Bp, H)                        # next layer input chunks
    # == torch.cat(final_state.view(L, 2, B, H)[-1], 1) -> (B, 2H)
    return jnp.concatenate([hN[0, :B], hN[1, :B]], axis=-1)


class Encoder:
    """JAX/Pallas port of the PyTorch Encoder (bidirectional multi-layer GRU)."""

    def __init__(self, encoder_size, num_layers, embed_size, key):
        self.encoder_size = encoder_size
        self.num_layers = num_layers
        self.embed_size = embed_size
        H = encoder_size
        k = 1.0 / (H ** 0.5)   # torch GRU default init: U(-1/sqrt(H), 1/sqrt(H))
        self.params = []
        for layer in range(num_layers):
            n_chunks = 1 if layer == 0 else 2       # input feature chunks [fwd | bwd]
            chunk_in = embed_size if layer == 0 else H
            key, k1, k2, k3, k4 = jax.random.split(key, 5)
            self.params.append(dict(
                # gate order along the 3H axis is torch's [r | z | n]
                w_ih=jax.random.uniform(k1, (2, n_chunks, chunk_in, 3 * H),
                                        jnp.float32, -k, k).astype(jnp.bfloat16),
                w_hh=jax.random.uniform(k2, (2, H, 3 * H),
                                        jnp.float32, -k, k).astype(jnp.bfloat16),
                b_ih=jax.random.uniform(k3, (2, 1, 3 * H), jnp.float32, -k, k),
                b_hh=jax.random.uniform(k4, (2, 1, 3 * H), jnp.float32, -k, k),
            ))

    def __call__(self, x):
        return _encoder_forward(self.params, x)


# ----------------------------------------------------------------------------
# Pure-JAX f32 reference (lax.scan GRU) for validation
# ----------------------------------------------------------------------------
def _reference_encoder(params, x):
    B, S, _ = x.shape
    H = params[0]["w_hh"].shape[1]

    def run_dir(x_tm, w_ih, w_hh, b_ih, b_hh, reverse):
        def step(h, x_t):
            gi = x_t @ w_ih + b_ih
            gh = h @ w_hh + b_hh
            r = jax.nn.sigmoid(gi[:, :H] + gh[:, :H])
            z = jax.nn.sigmoid(gi[:, H:2 * H] + gh[:, H:2 * H])
            n = jnp.tanh(gi[:, 2 * H:] + r * gh[:, 2 * H:])
            h_new = (1.0 - z) * n + z * h
            return h_new, h_new
        xs = x_tm[::-1] if reverse else x_tm
        hN, ys = jax.lax.scan(step, jnp.zeros((B, H), jnp.float32), xs)
        return (ys[::-1] if reverse else ys), hN

    layer_in = jnp.transpose(x, (1, 0, 2)).astype(jnp.float32)
    hf = hb = None
    for p in params:
        w_ih = p["w_ih"].astype(jnp.float32).reshape(2, -1, 3 * H)  # chunks -> full Din
        w_hh = p["w_hh"].astype(jnp.float32)
        yf, hf = run_dir(layer_in, w_ih[0], w_hh[0], p["b_ih"][0], p["b_hh"][0], False)
        yb, hb = run_dir(layer_in, w_ih[1], w_hh[1], p["b_ih"][1], p["b_hh"][1], True)
        layer_in = jnp.concatenate([yf, yb], axis=-1)
    return jnp.concatenate([hf, hb], axis=-1)


if __name__ == "__main__":
    key = jax.random.PRNGKey(0)
    pkey, xkey = jax.random.split(key)

    batch, seq, embed, hidden, layers = 2, 8, 32, 32, 2
    enc = Encoder(encoder_size=hidden, num_layers=layers, embed_size=embed, key=pkey)
    x = jax.random.normal(xkey, (batch, seq, embed), jnp.float32)

    out = jax.block_until_ready(enc(x))
    assert out.shape == (batch, 2 * hidden), out.shape
    assert bool(jnp.all(jnp.isfinite(out)))

    ref = jax.block_until_ready(_reference_encoder(enc.params, x))
    assert bool(jnp.allclose(out, ref, rtol=5e-2, atol=5e-2)), \
        float(jnp.max(jnp.abs(out - ref)))

    print("KERNEL_OK")
</pallas_src>

<mosaic_0001>
module attributes {stable_mosaic.version = 11 : i64} {
  func.func @_input_proj_kernel(%arg0: i32, %arg1: i32, %arg2: memref<1x64x32xbf16, #tpu.memory_space<vmem>>, %arg3: memref<1x1x32x96xbf16, #tpu.memory_space<vmem>>, %arg4: memref<1x1x96xf32, #tpu.memory_space<vmem>>, %arg5: memref<1x64x96xf32, #tpu.memory_space<vmem>>) attributes {dimension_semantics = [#tpu.dimension_semantics<parallel>, #tpu.dimension_semantics<parallel>], iteration_bounds = array<i64: 2, 1>, scalar_prefetch = 0 : i64, scratch_operands = 0 : i64, tpu.core_type = #tpu.core_type<tc>, window_params = [{transform_indices = @transform_0, window_bounds = array<i64: 1, 64, 32>}, {transform_indices = @transform_1, window_bounds = array<i64: 1, 1, 32, 96>}, {transform_indices = @transform_2, window_bounds = array<i64: 1, 1, 96>}, {transform_indices = @transform_3, window_bounds = array<i64: 1, 64, 96>}]} {
    %c0 = arith.constant 0 : index
    %c0_0 = arith.constant 0 : index
    %c0_1 = arith.constant 0 : index
    %0 = vector.load %arg2[%c0, %c0_0, %c0_1] : memref<1x64x32xbf16, #tpu.memory_space<vmem>>, vector<1x64x32xbf16>
    %1 = vector.shape_cast %0 : vector<1x64x32xbf16> to vector<64x32xbf16>
    %c0_2 = arith.constant 0 : index
    %c0_3 = arith.constant 0 : index
    %c0_4 = arith.constant 0 : index
    %c0_5 = arith.constant 0 : index
    %2 = vector.load %arg3[%c0_2, %c0_3, %c0_4, %c0_5] : memref<1x1x32x96xbf16, #tpu.memory_space<vmem>>, vector<1x1x32x96xbf16>
    %3 = vector.shape_cast %2 : vector<1x1x32x96xbf16> to vector<32x96xbf16>
    %cst = arith.constant dense<0.000000e+00> : vector<64x96xf32>
    %4 = tpu.matmul %1, %3, %cst {dimension_numbers = #tpu.dot_dimension_numbers<[1], [0], [0], [1], [0, 0, 1, 1], [], []>} : vector<64x32xbf16>, vector<32x96xbf16>, vector<64x96xf32> -> vector<64x96xf32>
    %c0_6 = arith.constant 0 : index
    %c0_7 = arith.constant 0 : index
    %c0_8 = arith.constant 0 : index
    %5 = vector.load %arg4[%c0_6, %c0_7, %c0_8] : memref<1x1x96xf32, #tpu.memory_space<vmem>>, vector<1x1x96xf32>
    %6 = vector.shape_cast %5 : vector<1x1x96xf32> to vector<1x96xf32>
    %7 = vector.broadcast %6 : vector<1x96xf32> to vector<64x96xf32>
    %8 = arith.addf %4, %7 : vector<64x96xf32>
    %c0_9 = arith.constant 0 : index
    %c0_10 = arith.constant 0 : index
    %c0_11 = arith.constant 0 : index
    %9 = vector.load %arg5[%c0_9, %c0_10, %c0_11] : memref<1x64x96xf32, #tpu.memory_space<vmem>>, vector<1x64x96xf32>
    %10 = vector.shape_cast %9 : vector<1x64x96xf32> to vector<64x96xf32>
    %11 = vector.shape_cast %8 : vector<64x96xf32> to vector<1x64x96xf32>
    tpu.vector_store %arg5[%c0_9, %c0_10, %c0_11], %11 {strides = array<i32>} : memref<1x64x96xf32, #tpu.memory_space<vmem>>, vector<1x64x96xf32>,
    return
  }
  func.func @transform_0(%arg0: i32, %arg1: i32) -> (i32, i32, i32) {
    %c0_i32 = arith.constant 0 : i32
    %c0_i32_0 = arith.constant 0 : i32
    %c0_i32_1 = arith.constant 0 : i32
    return %c0_i32, %arg1, %c0_i32_0 : i32, i32, i32
  }
  func.func @transform_1(%arg0: i32, %arg1: i32) -> (i32, i32, i32, i32) {
    %c0_i32 = arith.constant 0 : i32
    %c0_i32_0 = arith.constant 0 : i32
    %c0_i32_1 = arith.constant 0 : i32
    %c0_i32_2 = arith.constant 0 : i32
    return %arg0, %c0_i32, %c0_i32_0, %c0_i32_1 : i32, i32, i32, i32
  }
  func.func @transform_2(%arg0: i32, %arg1: i32) -> (i32, i32, i32) {
    %c0_i32 = arith.constant 0 : i32
    %c0_i32_0 = arith.constant 0 : i32
    %c0_i32_1 = arith.constant 0 : i32
    return %arg0, %c0_i32, %c0_i32_0 : i32, i32, i32
  }
  func.func @transform_3(%arg0: i32, %arg1: i32) -> (i32, i32, i32) {
    %c0_i32 = arith.constant 0 : i32
    %c0_i32_0 = arith.constant 0 : i32
    return %arg0, %arg1, %c0_i32 : i32, i32, i32
  }
}

module attributes {stable_mosaic.version = 11 : i64} {
  func.func @_input_proj_kernel(%arg0: i32, %arg1: i32, %arg2: memref<2x64x32xbf16, #tpu.memory_space<vmem>>, %arg3: memref<1x2x32x96xbf16, #tpu.memory_space<vmem>>, %arg4: memref<1x1x96xf32, #tpu.memory_space<vmem>>, %arg5: memref<1x64x96xf32, #tpu.memory_space<vmem>>) attributes {dimension_semantics = [#tpu.dimension_semantics<parallel>, #tpu.dimension_semantics<parallel>], iteration_bounds = array<i64: 2, 1>, scalar_prefetch = 0 : i64, scratch_operands = 0 : i64, tpu.core_type = #tpu.core_type<tc>, window_params = [{transform_indices = @transform_0, window_bounds = array<i64: 2, 64, 32>}, {transform_indices = @transform_1, window_bounds = array<i64: 1, 2, 32, 96>}, {transform_indices = @transform_2, window_bounds = array<i64: 1, 1, 96>}, {transform_indices = @transform_3, window_bounds = array<i64: 1, 64, 96>}]} {
    %c0 = arith.constant 0 : index
    %c0_0 = arith.constant 0 : index
    %c0_1 = arith.constant 0 : index
    %0 = vector.load %arg2[%c0, %c0_0, %c0_1] : memref<2x64x32xbf16, #tpu.memory_space<vmem>>, vector<1x64x32xbf16>
    %1 = vector.shape_cast %0 : vector<1x64x32xbf16> to vector<64x32xbf16>
    %c0_2 = arith.constant 0 : index
    %c0_3 = arith.constant 0 : index
    %c0_4 = arith.constant 0 : index
    %c0_5 = arith.constant 0 : index
    %2 = vector.load %arg3[%c0_2, %c0_3, %c0_4, %c0_5] : memref<1x2x32x96xbf16, #tpu.memory_space<vmem>>, vector<1x1x32x96xbf16>
    %3 = vector.shape_cast %2 : vector<1x1x32x96xbf16> to vector<32x96xbf16>
    %cst = arith.constant dense<0.000000e+00> : vector<64x96xf32>
    %4 = tpu.matmul %1, %3, %cst {dimension_numbers = #tpu.dot_dimension_numbers<[1], [0], [0], [1], [0, 0, 1, 1], [], []>} : vector<64x32xbf16>, vector<32x96xbf16>, vector<64x96xf32> -> vector<64x96xf32>
    %c1 = arith.constant 1 : index
    %c0_6 = arith.constant 0 : index
    %c0_7 = arith.constant 0 : index
    %5 = vector.load %arg2[%c1, %c0_6, %c0_7] : memref<2x64x32xbf16, #tpu.memory_space<vmem>>, vector<1x64x32xbf16>
    %6 = vector.shape_cast %5 : vector<1x64x32xbf16> to vector<64x32xbf16>
    %c0_8 = arith.constant 0 : index
    %c1_9 = arith.constant 1 : index
    %c0_10 = arith.constant 0 : index
    %c0_11 = arith.constant 0 : index
    %7 = vector.load %arg3[%c0_8, %c1_9, %c0_10, %c0_11] : memref<1x2x32x96xbf16, #tpu.memory_space<vmem>>, vector<1x1x32x96xbf16>
    %8 = vector.shape_cast %7 : vector<1x1x32x96xbf16> to vector<32x96xbf16>
    %cst_12 = arith.constant dense<0.000000e+00> : vector<64x96xf32>
    %9 = tpu.matmul %6, %8, %cst_12 {dimension_numbers = #tpu.dot_dimension_numbers<[1], [0], [0], [1], [0, 0, 1, 1], [], []>} : vector<64x32xbf16>, vector<32x96xbf16>, vector<64x96xf32> -> vector<64x96xf32>
    %10 = arith.addf %4, %9 : vector<64x96xf32>
    %c0_13 = arith.constant 0 : index
    %c0_14 = arith.constant 0 : index
    %c0_15 = arith.constant 0 : index
    %11 = vector.load %arg4[%c0_13, %c0_14, %c0_15] : memref<1x1x96xf32, #tpu.memory_space<vmem>>, vector<1x1x96xf32>
    %12 = vector.shape_cast %11 : vector<1x1x96xf32> to vector<1x96xf32>
    %13 = vector.broadcast %12 : vector<1x96xf32> to vector<64x96xf32>
    %14 = arith.addf %10, %13 : vector<64x96xf32>
    %c0_16 = arith.constant 0 : index
    %c0_17 = arith.constant 0 : index
    %c0_18 = arith.constant 0 : index
    %15 = vector.load %arg5[%c0_16, %c0_17, %c0_18] : memref<1x64x96xf32, #tpu.memory_space<vmem>>, vector<1x64x96xf32>
    %16 = vector.shape_cast %15 : vector<1x64x96xf32> to vector<64x96xf32>
    %17 = vector.shape_cast %14 : vector<64x96xf32> to vector<1x64x96xf32>
    tpu.vector_store %arg5[%c0_16, %c0_17, %c0_18], %17 {strides = array<i32>} : memref<1x64x96xf32, #tpu.memory_space<vmem>>, vector<1x64x96xf32>,
    return
  }
  func.func @transform_0(%arg0: i32, %arg1: i32) -> (i32, i32, i32) {
    %c0_i32 = arith.constant 0 : i32
    %c0_i32_0 = arith.constant 0 : i32
    %c0_i32_1 = arith.constant 0 : i32
    return %c0_i32, %arg1, %c0_i32_0 : i32, i32, i32
  }
  func.func @transform_1(%arg0: i32, %arg1: i32) -> (i32, i32, i32, i32) {
    %c0_i32 = arith.constant 0 : i32
    %c0_i32_0 = arith.constant 0 : i32
    %c0_i32_1 = arith.constant 0 : i32
    %c0_i32_2 = arith.constant 0 : i32
    return %arg0, %c0_i32, %c0_i32_0, %c0_i32_1 : i32, i32, i32, i32
  }
  func.func @transform_2(%arg0: i32, %arg1: i32) -> (i32, i32, i32) {
    %c0_i32 = arith.constant 0 : i32
    %c0_i32_0 = arith.constant 0 : i32
    %c0_i32_1 = arith.constant 0 : i32
    return %arg0, %c0_i32, %c0_i32_0 : i32, i32, i32
  }
  func.func @transform_3(%arg0: i32, %arg1: i32) -> (i32, i32, i32) {
    %c0_i32 = arith.constant 0 : i32
    %c0_i32_0 = arith.constant 0 : i32
    return %arg0, %arg1, %c0_i32 : i32, i32, i32
  }
}

module attributes {stable_mosaic.version = 11 : i64} {
  func.func @_gru_recurrence_kernel(%arg0: i32, %arg1: i32, %arg2: memref<1x8x8x96xf32, #tpu.memory_space<vmem>>, %arg3: memref<1x32x96xbf16, #tpu.memory_space<vmem>>, %arg4: memref<1x1x96xf32, #tpu.memory_space<vmem>>, %arg5: memref<1x8x8x32xbf16, #tpu.memory_space<vmem>>, %arg6: memref<1x8x32xf32, #tpu.memory_space<vmem>>, %arg7: memref<8x32xf32, #tpu.memory_space<vmem>>) attributes {dimension_semantics = [#tpu.dimension_semantics<parallel>, #tpu.dimension_semantics<parallel>], iteration_bounds = array<i64: 2, 1>, scalar_prefetch = 0 : i64, scratch_operands = 1 : i64, tpu.core_type = #tpu.core_type<tc>, window_params = [{transform_indices = @transform_0, window_bounds = array<i64: 1, 8, 8, 96>}, {transform_indices = @transform_1, window_bounds = array<i64: 1, 32, 96>}, {transform_indices = @transform_2, window_bounds = array<i64: 1, 1, 96>}, {transform_indices = @transform_3, window_bounds = array<i64: 1, 8, 8, 32>}, {transform_indices = @transform_4, window_bounds = array<i64: 1, 8, 32>}]} {
    %cst = arith.constant 0.000000e+00 : f32
    %0 = vector.broadcast %cst : f32 to vector<8x32xf32>
    %c0 = arith.constant 0 : index
    %c0_0 = arith.constant 0 : index
    %1 = vector.load %arg7[%c0, %c0_0] : memref<8x32xf32, #tpu.memory_space<vmem>>, vector<8x32xf32>
    tpu.vector_store %arg7[%c0, %c0_0], %0 {strides = array<i32>} : memref<8x32xf32, #tpu.memory_space<vmem>>, vector<8x32xf32>,
    %c0_1 = arith.constant 0 : index
    %c0_2 = arith.constant 0 : index
    %c0_3 = arith.constant 0 : index
    %2 = vector.load %arg3[%c0_1, %c0_2, %c0_3] : memref<1x32x96xbf16, #tpu.memory_space<vmem>>, vector<1x32x96xbf16>
    %3 = vector.shape_cast %2 : vector<1x32x96xbf16> to vector<32x96xbf16>
    %c0_4 = arith.constant 0 : index
    %c0_5 = arith.constant 0 : index
    %c0_6 = arith.constant 0 : index
    %4 = vector.load %arg4[%c0_4, %c0_5, %c0_6] : memref<1x1x96xf32, #tpu.memory_space<vmem>>, vector<1x1x96xf32>
    %5 = vector.shape_cast %4 : vector<1x1x96xf32> to vector<1x96xf32>
    %6 = vector.shape_cast %5 : vector<1x96xf32> to vector<1x96xf32>
    %7 = vector.broadcast %6 : vector<1x96xf32> to vector<8x96xf32>
    %c0_i32 = arith.constant 0 : i32
    %c8_i32 = arith.constant 8 : i32
    %8 = arith.addi %c0_i32, %c8_i32 : i32
    %c1_i32 = arith.constant 1 : i32
    scf.for %arg8 = %c0_i32 to %8 step %c1_i32  : i32 {
      %c1_i32_13 = arith.constant 1 : i32
      %13 = arith.muli %arg8, %c1_i32_13 : i32
      %c0_i32_14 = arith.constant 0 : i32
      %14 = arith.addi %c0_i32_14, %13 : i32
      %c7_i32 = arith.constant 7 : i32
      %15 = arith.muli %arg0, %c7_i32 : i32
      %c2_i32 = arith.constant 2 : i32
      %16 = arith.muli %c2_i32, %arg0 : i32
      %c1_i32_15 = arith.constant 1 : i32
      %17 = arith.subi %c1_i32_15, %16 : i32
      %18 = arith.muli %17, %14 : i32
      %19 = arith.addi %15, %18 : i32
      %c0_16 = arith.constant 0 : index
      %20 = arith.index_cast %19 : i32 to index
      %c0_17 = arith.constant 0 : index
      %c0_18 = arith.constant 0 : index
      %21 = vector.load %arg2[%c0_16, %20, %c0_17, %c0_18] : memref<1x8x8x96xf32, #tpu.memory_space<vmem>>, vector<1x1x8x96xf32>
      %22 = vector.shape_cast %21 : vector<1x1x8x96xf32> to vector<8x96xf32>
      %c0_19 = arith.constant 0 : index
      %c0_20 = arith.constant 0 : index
      %23 = vector.load %arg7[%c0_19, %c0_20] : memref<8x32xf32, #tpu.memory_space<vmem>>, vector<8x32xf32>
      %24 = arith.truncf %23 : vector<8x32xf32> to vector<8x32xbf16>
      %cst_21 = arith.constant dense<0.000000e+00> : vector<8x96xf32>
      %25 = tpu.matmul %24, %3, %cst_21 {dimension_numbers = #tpu.dot_dimension_numbers<[1], [0], [0], [1], [0, 0, 1, 1], [], []>} : vector<8x32xbf16>, vector<32x96xbf16>, vector<8x96xf32> -> vector<8x96xf32>
      %26 = arith.addf %25, %7 : vector<8x96xf32>
      %27 = vector.extract_strided_slice %22 {offsets = [0, 0], sizes = [8, 32], strides = [1, 1]} : vector<8x96xf32> to vector<8x32xf32>
      %28 = vector.extract_strided_slice %26 {offsets = [0, 0], sizes = [8, 32], strides = [1, 1]} : vector<8x96xf32> to vector<8x32xf32>
      %29 = arith.addf %27, %28 : vector<8x32xf32>
      %30 = arith.negf %29 : vector<8x32xf32>
      %31 = math.exp %30 : vector<8x32xf32>
      %cst_22 = arith.constant 1.000000e+00 : f32
      %32 = vector.broadcast %cst_22 : f32 to vector<8x32xf32>
      %33 = arith.addf %32, %31 : vector<8x32xf32>
      %34 = arith.divf %32, %33 : vector<8x32xf32>
      %35 = vector.extract_strided_slice %22 {offsets = [0, 32], sizes = [8, 32], strides = [1, 1]} : vector<8x96xf32> to vector<8x32xf32>
      %36 = vector.extract_strided_slice %26 {offsets = [0, 32], sizes = [8, 32], strides = [1, 1]} : vector<8x96xf32> to vector<8x32xf32>
      %37 = arith.addf %35, %36 : vector<8x32xf32>
      %38 = arith.negf %37 : vector<8x32xf32>
      %39 = math.exp %38 : vector<8x32xf32>
      %cst_23 = arith.constant 1.000000e+00 : f32
      %40 = vector.broadcast %cst_23 : f32 to vector<8x32xf32>
      %41 = arith.addf %40, %39 : vector<8x32xf32>
      %42 = arith.divf %40, %41 : vector<8x32xf32>
      %43 = vector.extract_strided_slice %22 {offsets = [0, 64], sizes = [8, 32], strides = [1, 1]} : vector<8x96xf32> to vector<8x32xf32>
      %44 = vector.extract_strided_slice %26 {offsets = [0, 64], sizes = [8, 32], strides = [1, 1]} : vector<8x96xf32> to vector<8x32xf32>
      %45 = arith.mulf %34, %44 : vector<8x32xf32>
      %46 = arith.addf %43, %45 : vector<8x32xf32>
      %47 = math.tanh %46 : vector<8x32xf32>
      %cst_24 = arith.constant 1.000000e+00 : f32
      %48 = vector.broadcast %cst_24 : f32 to vector<8x32xf32>
      %49 = arith.subf %48, %42 : vector<8x32xf32>
      %50 = arith.mulf %49, %47 : vector<8x32xf32>
      %51 = arith.mulf %42, %23 : vector<8x32xf32>
      %52 = arith.addf %50, %51 : vector<8x32xf32>
      %c0_25 = arith.constant 0 : index
      %c0_26 = arith.constant 0 : index
      %53 = vector.load %arg7[%c0_25, %c0_26] : memref<8x32xf32, #tpu.memory_space<vmem>>, vector<8x32xf32>
      tpu.vector_store %arg7[%c0_25, %c0_26], %52 {strides = array<i32>} : memref<8x32xf32, #tpu.memory_space<vmem>>, vector<8x32xf32>,
      %54 = arith.truncf %52 : vector<8x32xf32> to vector<8x32xbf16>
      %c0_27 = arith.constant 0 : index
      %55 = arith.index_cast %19 : i32 to index
      %c0_28 = arith.constant 0 : index
      %c0_29 = arith.constant 0 : index
      %56 = vector.load %arg5[%c0_27, %55, %c0_28, %c0_29] : memref<1x8x8x32xbf16, #tpu.memory_space<vmem>>, vector<1x1x8x32xbf16>
      %57 = vector.shape_cast %56 : vector<1x1x8x32xbf16> to vector<8x32xbf16>
      %58 = vector.shape_cast %54 : vector<8x32xbf16> to vector<1x1x8x32xbf16>
      tpu.vector_store %arg5[%c0_27, %55, %c0_28, %c0_29], %58 {strides = array<i32>} : memref<1x8x8x32xbf16, #tpu.memory_space<vmem>>, vector<1x1x8x32xbf16>,
    }
    %c8_i32_7 = arith.constant 8 : i32
    %c0_8 = arith.constant 0 : index
    %c0_9 = arith.constant 0 : index
    %9 = vector.load %arg7[%c0_8, %c0_9] : memref<8x32xf32, #tpu.memory_space<vmem>>, vector<8x32xf32>
    %c0_10 = arith.constant 0 : index
    %c0_11 = arith.constant 0 : index
    %c0_12 = arith.constant 0 : index
    %10 = vector.load %arg6[%c0_10, %c0_11, %c0_12] : memref<1x8x32xf32, #tpu.memory_space<vmem>>, vector<1x8x32xf32>
    %11 = vector.shape_cast %10 : vector<1x8x32xf32> to vector<8x32xf32>
    %12 = vector.shape_cast %9 : vector<8x32xf32> to vector<1x8x32xf32>
    tpu.vector_store %arg6[%c0_10, %c0_11, %c0_12], %12 {strides = array<i32>} : memref<1x8x32xf32, #tpu.memory_space<vmem>>, vector<1x8x32xf32>,
    return
  }
  func.func @transform_0(%arg0: i32, %arg1: i32) -> (i32, i32, i32, i32) {
    %c0_i32 = arith.constant 0 : i32
    %c0_i32_0 = arith.constant 0 : i32
    %c0_i32_1 = arith.constant 0 : i32
    return %arg0, %c0_i32, %arg1, %c0_i32_0 : i32, i32, i32, i32
  }
  func.func @transform_1(%arg0: i32, %arg1: i32) -> (i32, i32, i32) {
    %c0_i32 = arith.constant 0 : i32
    %c0_i32_0 = arith.constant 0 : i32
    %c0_i32_1 = arith.constant 0 : i32
    return %arg0, %c0_i32, %c0_i32_0 : i32, i32, i32
  }
  func.func @transform_2(%arg0: i32, %arg1: i32) -> (i32, i32, i32) {
    %c0_i32 = arith.constant 0 : i32
    %c0_i32_0 = arith.constant 0 : i32
    %c0_i32_1 = arith.constant 0 : i32
    return %arg0, %c0_i32, %c0_i32_0 : i32, i32, i32
  }
  func.func @transform_3(%arg0: i32, %arg1: i32) -> (i32, i32, i32, i32) {
    %c0_i32 = arith.constant 0 : i32
    %c0_i32_0 = arith.constant 0 : i32
    %c0_i32_1 = arith.constant 0 : i32
    return %arg0, %c0_i32, %arg1, %c0_i32_0 : i32, i32, i32, i32
  }
  func.func @transform_4(%arg0: i32, %arg1: i32) -> (i32, i32, i32) {
    %c0_i32 = arith.constant 0 : i32
    %c0_i32_0 = arith.constant 0 : i32
    return %arg0, %arg1, %c0_i32 : i32, i32, i32
  }
}

module attributes {stable_mosaic.version = 11 : i64} {
  func.func @_gru_recurrence_kernel(%arg0: i32, %arg1: i32, %arg2: memref<1x8x8x96xf32, #tpu.memory_space<vmem>>, %arg3: memref<1x32x96xbf16, #tpu.memory_space<vmem>>, %arg4: memref<1x1x96xf32, #tpu.memory_space<vmem>>, %arg5: memref<1x8x8x32xbf16, #tpu.memory_space<vmem>>, %arg6: memref<1x8x32xf32, #tpu.memory_space<vmem>>, %arg7: memref<8x32xf32, #tpu.memory_space<vmem>>) attributes {dimension_semantics = [#tpu.dimension_semantics<parallel>, #tpu.dimension_semantics<parallel>], iteration_bounds = array<i64: 2, 1>, scalar_prefetch = 0 : i64, scratch_operands = 1 : i64, tpu.core_type = #tpu.core_type<tc>, window_params = [{transform_indices = @transform_0, window_bounds = array<i64: 1, 8, 8, 96>}, {transform_indices = @transform_1, window_bounds = array<i64: 1, 32, 96>}, {transform_indices = @transform_2, window_bounds = array<i64: 1, 1, 96>}, {transform_indices = @transform_3, window_bounds = array<i64: 1, 8, 8, 32>}, {transform_indices = @transform_4, window_bounds = array<i64: 1, 8, 32>}]} {
    %cst = arith.constant 0.000000e+00 : f32
    %0 = vector.broadcast %cst : f32 to vector<8x32xf32>
    %c0 = arith.constant 0 : index
    %c0_0 = arith.constant 0 : index
    %1 = vector.load %arg7[%c0, %c0_0] : memref<8x32xf32, #tpu.memory_space<vmem>>, vector<8x32xf32>
    tpu.vector_store %arg7[%c0, %c0_0], %0 {strides = array<i32>} : memref<8x32xf32, #tpu.memory_space<vmem>>, vector<8x32xf32>,
    %c0_1 = arith.constant 0 : index
    %c0_2 = arith.constant 0 : index
    %c0_3 = arith.constant 0 : index
    %2 = vector.load %arg3[%c0_1, %c0_2, %c0_3] : memref<1x32x96xbf16, #tpu.memory_space<vmem>>, vector<1x32x96xbf16>
    %3 = vector.shape_cast %2 : vector<1x32x96xbf16> to vector<32x96xbf16>
    %c0_4 = arith.constant 0 : index
    %c0_5 = arith.constant 0 : index
    %c0_6 = arith.constant 0 : index
    %4 = vector.load %arg4[%c0_4, %c0_5, %c0_6] : memref<1x1x96xf32, #tpu.memory_space<vmem>>, vector<1x1x96xf32>
    %5 = vector.shape_cast %4 : vector<1x1x96xf32> to vector<1x96xf32>
    %6 = vector.shape_cast %5 : vector<1x96xf32> to vector<1x96xf32>
    %7 = vector.broadcast %6 : vector<1x96xf32> to vector<8x96xf32>
    %c0_i32 = arith.constant 0 : i32
    %c8_i32 = arith.constant 8 : i32
    %8 = arith.addi %c0_i32, %c8_i32 : i32
    %c1_i32 = arith.constant 1 : i32
    scf.for %arg8 = %c0_i32 to %8 step %c1_i32  : i32 {
      %c1_i32_13 = arith.constant 1 : i32
      %13 = arith.muli %arg8, %c1_i32_13 : i32
      %c0_i32_14 = arith.constant 0 : i32
      %14 = arith.addi %c0_i32_14, %13 : i32
      %c7_i32 = arith.constant 7 : i32
      %15 = arith.muli %arg0, %c7_i32 : i32
      %c2_i32 = arith.constant 2 : i32
      %16 = arith.muli %c2_i32, %arg0 : i32
      %c1_i32_15 = arith.constant 1 : i32
      %17 = arith.subi %c1_i32_15, %16 : i32
      %18 = arith.muli %17, %14 : i32
      %19 = arith.addi %15, %18 : i32
      %c0_16 = arith.constant 0 : index
      %20 = arith.index_cast %19 : i32 to index
      %c0_17 = arith.constant 0 : index
      %c0_18 = arith.constant 0 : index
      %21 = vector.load %arg2[%c0_16, %20, %c0_17, %c0_18] : memref<1x8x8x96xf32, #tpu.memory_space<vmem>>, vector<1x1x8x96xf32>
      %22 = vector.shape_cast %21 : vector<1x1x8x96xf32> to vector<8x96xf32>
      %c0_19 = arith.constant 0 : index
      %c0_20 = arith.constant 0 : index
      %23 = vector.load %arg7[%c0_19, %c0_20] : memref<8x32xf32, #tpu.memory_space<vmem>>, vector<8x32xf32>
      %24 = arith.truncf %23 : vector<8x32xf32> to vector<8x32xbf16>
      %cst_21 = arith.constant dense<0.000000e+00> : vector<8x96xf32>
      %25 = tpu.matmul %24, %3, %cst_21 {dimension_numbers = #tpu.dot_dimension_numbers<[1], [0], [0], [1], [0, 0, 1, 1], [], []>} : vector<8x32xbf16>, vector<32x96xbf16>, vector<8x96xf32> -> vector<8x96xf32>
      %26 = arith.addf %25, %7 : vector<8x96xf32>
      %27 = vector.extract_strided_slice %22 {offsets = [0, 0], sizes = [8, 32], strides = [1, 1]} : vector<8x96xf32> to vector<8x32xf32>
      %28 = vector.extract_strided_slice %26 {offsets = [0, 0], sizes = [8, 32], strides = [1, 1]} : vector<8x96xf32> to vector<8x32xf32>
      %29 = arith.addf %27, %28 : vector<8x32xf32>
      %30 = arith.negf %29 : vector<8x32xf32>
      %31 = math.exp %30 : vector<8x32xf32>
      %cst_22 = arith.constant 1.000000e+00 : f32
      %32 = vector.broadcast %cst_22 : f32 to vector<8x32xf32>
      %33 = arith.addf %32, %31 : vector<8x32xf32>
      %34 = arith.divf %32, %33 : vector<8x32xf32>
      %35 = vector.extract_strided_slice %22 {offsets = [0, 32], sizes = [8, 32], strides = [1, 1]} : vector<8x96xf32> to vector<8x32xf32>
      %36 = vector.extract_strided_slice %26 {offsets = [0, 32], sizes = [8, 32], strides = [1, 1]} : vector<8x96xf32> to vector<8x32xf32>
      %37 = arith.addf %35, %36 : vector<8x32xf32>
      %38 = arith.negf %37 : vector<8x32xf32>
      %39 = math.exp %38 : vector<8x32xf32>
      %cst_23 = arith.constant 1.000000e+00 : f32
      %40 = vector.broadcast %cst_23 : f32 to vector<8x32xf32>
      %41 = arith.addf %40, %39 : vector<8x32xf32>
      %42 = arith.divf %40, %41 : vector<8x32xf32>
      %43 = vector.extract_strided_slice %22 {offsets = [0, 64], sizes = [8, 32], strides = [1, 1]} : vector<8x96xf32> to vector<8x32xf32>
      %44 = vector.extract_strided_slice %26 {offsets = [0, 64], sizes = [8, 32], strides = [1, 1]} : vector<8x96xf32> to vector<8x32xf32>
      %45 = arith.mulf %34, %44 : vector<8x32xf32>
      %46 = arith.addf %43, %45 : vector<8x32xf32>
      %47 = math.tanh %46 : vector<8x32xf32>
      %cst_24 = arith.constant 1.000000e+00 : f32
      %48 = vector.broadcast %cst_24 : f32 to vector<8x32xf32>
      %49 = arith.subf %48, %42 : vector<8x32xf32>
      %50 = arith.mulf %49, %47 : vector<8x32xf32>
      %51 = arith.mulf %42, %23 : vector<8x32xf32>
      %52 = arith.addf %50, %51 : vector<8x32xf32>
      %c0_25 = arith.constant 0 : index
      %c0_26 = arith.constant 0 : index
      %53 = vector.load %arg7[%c0_25, %c0_26] : memref<8x32xf32, #tpu.memory_space<vmem>>, vector<8x32xf32>
      tpu.vector_store %arg7[%c0_25, %c0_26], %52 {strides = array<i32>} : memref<8x32xf32, #tpu.memory_space<vmem>>, vector<8x32xf32>,
      %54 = arith.truncf %52 : vector<8x32xf32> to vector<8x32xbf16>
      %c0_27 = arith.constant 0 : index
      %55 = arith.index_cast %19 : i32 to index
      %c0_28 = arith.constant 0 : index
      %c0_29 = arith.constant 0 : index
      %56 = vector.load %arg5[%c0_27, %55, %c0_28, %c0_29] : memref<1x8x8x32xbf16, #tpu.memory_space<vmem>>, vector<1x1x8x32xbf16>
      %57 = vector.shape_cast %56 : vector<1x1x8x32xbf16> to vector<8x32xbf16>
      %58 = vector.shape_cast %54 : vector<8x32xbf16> to vector<1x1x8x32xbf16>
      tpu.vector_store %arg5[%c0_27, %55, %c0_28, %c0_29], %58 {strides = array<i32>} : memref<1x8x8x32xbf16, #tpu.memory_space<vmem>>, vector<1x1x8x32xbf16>,
    }
    %c8_i32_7 = arith.constant 8 : i32
    %c0_8 = arith.constant 0 : index
    %c0_9 = arith.constant 0 : index
    %9 = vector.load %arg7[%c0_8, %c0_9] : memref<8x32xf32, #tpu.memory_space<vmem>>, vector<8x32xf32>
    %c0_10 = arith.constant 0 : index
    %c0_11 = arith.constant 0 : index
    %c0_12 = arith.constant 0 : index
    %10 = vector.load %arg6[%c0_10, %c0_11, %c0_12] : memref<1x8x32xf32, #tpu.memory_space<vmem>>, vector<1x8x32xf32>
    %11 = vector.shape_cast %10 : vector<1x8x32xf32> to vector<8x32xf32>
    %12 = vector.shape_cast %9 : vector<8x32xf32> to vector<1x8x32xf32>
    tpu.vector_store %arg6[%c0_10, %c0_11, %c0_12], %12 {strides = array<i32>} : memref<1x8x32xf32, #tpu.memory_space<vmem>>, vector<1x8x32xf32>,
    return
  }
  func.func @transform_0(%arg0: i32, %arg1: i32) -> (i32, i32, i32, i32) {
    %c0_i32 = arith.constant 0 : i32
    %c0_i32_0 = arith.constant 0 : i32
    %c0_i32_1 = arith.constant 0 : i32
    return %arg0, %c0_i32, %arg1, %c0_i32_0 : i32, i32, i32, i32
  }
  func.func @transform_1(%arg0: i32, %arg1: i32) -> (i32, i32, i32) {
    %c0_i32 = arith.constant 0 : i32
    %c0_i32_0 = arith.constant 0 : i32
    %c0_i32_1 = arith.constant 0 : i32
    return %arg0, %c0_i32, %c0_i32_0 : i32, i32, i32
  }
  func.func @transform_2(%arg0: i32, %arg1: i32) -> (i32, i32, i32) {
    %c0_i32 = arith.constant 0 : i32
    %c0_i32_0 = arith.constant 0 : i32
    %c0_i32_1 = arith.constant 0 : i32
    return %arg0, %c0_i32, %c0_i32_0 : i32, i32, i32
  }
  func.func @transform_3(%arg0: i32, %arg1: i32) -> (i32, i32, i32, i32) {
    %c0_i32 = arith.constant 0 : i32
    %c0_i32_0 = arith.constant 0 : i32
    %c0_i32_1 = arith.constant 0 : i32
    return %arg0, %c0_i32, %arg1, %c0_i32_0 : i32, i32, i32, i32
  }
  func.func @transform_4(%arg0: i32, %arg1: i32) -> (i32, i32, i32) {
    %c0_i32 = arith.constant 0 : i32
    %c0_i32_0 = arith.constant 0 : i32
    return %arg0, %arg1, %c0_i32 : i32, i32, i32
  }
}

</mosaic_0001>

<llo_original>
// kernel: _encoder_forward.6
$region0: #{_encoder_forward.6}
  #allocation0 [shape = 'u32[]', space=smem, size = 0x4, offset = 0x4, fixed_abs, tag = 'smem constant byte address 0x4 - core index']
  #allocation1 [shape = 'u32[144,128]{1,0:T(1,128)}', space=vmem, size = 0x12000, scoped, tag = 'internal scratch']
  %s0 = inlined_call_operand.vmem [shape: bf16[2,64,32], index: 0, kind: input, shape index: {}]
  %s1 = inlined_call_operand.vmem [shape: bf16[2,2,32,96], index: 1, kind: input, shape index: {}]
  %s2 = inlined_call_operand.vmem [shape: f32[2,1,96], index: 2, kind: input, shape index: {}]
  %s3 = inlined_call_operand.vmem [shape: f32[2,64,96], index: 3, kind: output, shape index: {}]
  %s4 = sld [smem:[#allocation0]]
  $region45: #{_encoder_forward.6} parent=0
    _
  %s6 = ssub.s32 1, %s4
  %s7 = scalar_select 0, %s6, %s4
  loop: start=0, step=1, limit=4
  $region2: #{_encoder_forward.6} parent=0 // loop_pre_header
    _
  $region3: #{_encoder_forward.6} parent=0 // loop_header
    %s9 = sphi 0, %s13
    %p10 = scmp.ge.s32.totalorder %s9, 4
    %s16 = sphi 0, %s28
    %s17 = sphi 0, %s24
    %s18 = sphi 0, %s16
    %s19 = sphi 0, %s17
    %s20 = sphi 0, %s18
    %s21 = sphi 0, %s19
    %s31 = sphi 0, %s33
    %s34 = sphi 0, %s31
    %s35 = sphi 0, %s34
    %s51 = sphi 0, %s35
    %s57 = sphi 0, %s59
    %s60 = sphi 0, %s57
    %s61 = sphi 0, %s60
    %s77 = sphi 0, %s61
    %s83 = sphi 0, %s85
    %s86 = sphi 0, %s83
    %s87 = sphi 0, %s86
    %s103 = sphi 0, %s87
    %s111 = sphi 0, %s113
    %s114 = sphi 0, %s111
    %s115 = sphi 0, %s114
    %s131 = sphi 0, %s115
  $region4: #{_encoder_forward.6} parent=0 // loop_header_branch
    %12 = sbr.rel (%p10) target = $region8
  $region5: #{_encoder_forward.6} parent=0 // loop_body
    %s14 = ssub.s32 %s9, 1
    %s15 = ssub.s32 %s9, 2
    %s22 = sadd.s32 1, %s17
    %p23 = scmp.ge.s32.totalorder %s22, 1
    %s24 = scalar_select %p23, 0, %s22
    %s25 = sadd.s32 1, %s16
    %s26 = scalar_select %p23, %s25, %s16
    %p27 = scmp.ge.s32.totalorder %s26, 2
    %s28 = scalar_select %p27, 0, %s26
    %s29 = ssub.s32 %s17, %s24
    %p30 = scmp.eq.s32.totalorder %s29, 0
    %s32 = sadd.s32 %s31, 1
    %s33 = scalar_select %p30, %s31, %s32
    %p36 = pneg %p30
    %p37 = scmp.eq.s32.totalorder %s9, 1
    %p38 = por %p36, %p37
    %p39 = scmp.ne.s32.totalorder %s31, %s34
    %p40 = scmp.eq.s32.totalorder %s9, 0
    %p41 = por %p39, %p40
    %p42 = scmp.ne.s32.totalorder %s31, %s34
    %p43 = scmp.eq.s32.totalorder %s14, 1
    %p44 = por %p42, %p43
    %p45 = scmp.ne.s32.totalorder %s34, %s35
    %p46 = scmp.eq.s32.totalorder %s14, 0
    %p47 = por %p45, %p46
    %p48 = scmp.ne.s32.totalorder %s34, %s35
    %p49 = scmp.eq.s32.totalorder %s15, 1
    %p50 = por %p48, %p49
    %p52 = scmp.ne.s32.totalorder %s35, %s51
    %p53 = scmp.eq.s32.totalorder %s15, 0
    %p54 = por %p52, %p53
    %s55 = ssub.s32 %s16, %s28
    %p56 = scmp.eq.s32.totalorder %s55, 0
    %s58 = sadd.s32 %s57, 1
    %s59 = scalar_select %p56, %s57, %s58
    %p62 = pneg %p56
    %p63 = scmp.eq.s32.totalorder %s9, 1
    %p64 = por %p62, %p63
    %p65 = scmp.ne.s32.totalorder %s57, %s60
    %p66 = scmp.eq.s32.totalorder %s9, 0
    %p67 = por %p65, %p66
    %p68 = scmp.ne.s32.totalorder %s57, %s60
    %p69 = scmp.eq.s32.totalorder %s14, 1
    %p70 = por %p68, %p69
    %p71 = scmp.ne.s32.totalorder %s60, %s61
    %p72 = scmp.eq.s32.totalorder %s14, 0
    %p73 = por %p71, %p72
    %p74 = scmp.ne.s32.totalorder %s60, %s61
    %p75 = scmp.eq.s32.totalorder %s15, 1
    %p76 = por %p74, %p75
    %p78 = scmp.ne.s32.totalorder %s61, %s77
    %p79 = scmp.eq.s32.totalorder %s15, 0
    %p80 = por %p78, %p79
    %s81 = ssub.s32 %s16, %s28
    %p82 = scmp.eq.s32.totalorder %s81, 0
    %s84 = sadd.s32 %s83, 1
    %s85 = scalar_select %p82, %s83, %s84
    %p88 = pneg %p82
    %p89 = scmp.eq.s32.totalorder %s9, 1
    %p90 = por %p88, %p89
    %p91 = scmp.ne.s32.totalorder %s83, %s86
    %p92 = scmp.eq.s32.totalorder %s9, 0
    %p93 = por %p91, %p92
    %p94 = scmp.ne.s32.totalorder %s83, %s86
    %p95 = scmp.eq.s32.totalorder %s14, 1
    %p96 = por %p94, %p95
    %p97 = scmp.ne.s32.totalorder %s86, %s87
    %p98 = scmp.eq.s32.totalorder %s14, 0
    %p99 = por %p97, %p98
    %p100 = scmp.ne.s32.totalorder %s86, %s87
    %p101 = scmp.eq.s32.totalorder %s15, 1
    %p102 = por %p100, %p101
    %p104 = scmp.ne.s32.totalorder %s87, %s103
    %p105 = scmp.eq.s32.totalorder %s15, 0
    %p106 = por %p104, %p105
    %s107 = ssub.s32 %s16, %s28
    %s108 = ssub.s32 %s17, %s24
    %s109 = sor.u32 %s107, %s108
    %p110 = scmp.eq.s32.totalorder %s109, 0
    %s112 = sadd.s32 %s111, 1
    %s113 = scalar_select %p110, %s111, %s112
    %p116 = pneg %p110
    %p117 = scmp.eq.s32.totalorder %s9, 1
    %p118 = por %p116, %p117
    %p119 = scmp.ne.s32.totalorder %s111, %s114
    %p120 = scmp.eq.s32.totalorder %s9, 0
    %p121 = por %p119, %p120
    %p122 = scmp.ne.s32.totalorder %s111, %s114
    %p123 = scmp.eq.s32.totalorder %s14, 1
    %p124 = por %p122, %p123
    %p125 = scmp.ne.s32.totalorder %s114, %s115
    %p126 = scmp.eq.s32.totalorder %s14, 0
    %p127 = por %p125, %p126
    %p128 = scmp.ne.s32.totalorder %s114, %s115
    %p129 = scmp.eq.s32.totalorder %s15, 1
    %p130 = por %p128, %p129
    %p132 = scmp.ne.s32.totalorder %s115, %s131
    %p133 = scmp.eq.s32.totalorder %s15, 0
    %p134 = por %p132, %p133
    %p135 = scmp.le.s32.totalorder 1, %s9
    %p136 = scmp.lt.s32.totalorder %s9, 3
    %p137 = pnand %p135, %p136
    %p138 = pneg %p137
    // Predicated region
    $region9: #{_encoder_forward.6} parent=5 // pred_check
      _
    $region10: #{_encoder_forward.6} parent=5 // pred_check_branch
      %140 = sbr.rel (%p137) target = $region12
    $region11: #{_encoder_forward.6} parent=5 // pred_region
      %s141 = ssub.s32 %s9, 1
      // Predicated region
      $region13: #{_encoder_forward.6} parent=11 // pred_check
        %p142 = pneg %p47
      $region14: #{_encoder_forward.6} parent=11 // pred_check_branch
        %144 = sbr.rel (%p142) target = $region16
      $region15: #{_encoder_forward.6} parent=11 // pred_region
        %s145 = smul.u32 8, %s19
        %p146 = scmp.lt.s32.totalorder %s145, 7
        %s147 = scalar_select %p146, %s145, 7
        %s148 = smul.addr %s147, 4
        %s149 = scalar_lea.vmem %s0, %s148
        %s150 = smul.u32 8, %s19
      $region16: #{_encoder_forward.6} parent=11 // pred_fallthru
        _
    $region12: #{_encoder_forward.6} parent=5 // pred_fallthru
      _
    %p151 = scmp.lt.s32.totalorder %s9, 2
    // Predicated region
    $region17: #{_encoder_forward.6} parent=5 // pred_check
      %p152 = pneg %p151
    $region18: #{_encoder_forward.6} parent=5 // pred_check_branch
      %154 = sbr.rel (%p152) target = $region20
    $region19: #{_encoder_forward.6} parent=5 // pred_region
      // Predicated region
      $region21: #{_encoder_forward.6} parent=19 // pred_check
        %p155 = pneg %p67
      $region22: #{_encoder_forward.6} parent=19 // pred_check_branch
        %157 = sbr.rel (%p155) target = $region24
      $region23: #{_encoder_forward.6} parent=19 // pred_region
        %p158 = scmp.lt.s32.totalorder %s16, 1
        %s159 = scalar_select %p158, %s16, 1
        %s160 = smul.addr %s159, 8
        %s161 = smul.addr %s160, 4
        %s162 = scalar_lea.vmem %s1, %s161
      $region24: #{_encoder_forward.6} parent=19 // pred_fallthru
        _
      // Predicated region
      $region25: #{_encoder_forward.6} parent=19 // pred_check
        %p163 = pneg %p93
      $region26: #{_encoder_forward.6} parent=19 // pred_check_branch
        %165 = sbr.rel (%p163) target = $region28
      $region27: #{_encoder_forward.6} parent=19 // pred_region
        %p166 = scmp.lt.s32.totalorder %s16, 1
        %s167 = scalar_select %p166, %s16, 1
        %s168 = scalar_lea.vmem %s2, %s167
      $region28: #{_encoder_forward.6} parent=19 // pred_fallthru
        _
    $region20: #{_encoder_forward.6} parent=5 // pred_fallthru
      _
    %p169 = scmp.le.s32.totalorder 1, %s9
    %p170 = scmp.lt.s32.totalorder %s9, 3
    %p171 = pnand %p169, %p170
    %p172 = pneg %p171
    // Predicated region
    $region29: #{_encoder_forward.6} parent=5 // pred_check
      _
    $region30: #{_encoder_forward.6} parent=5 // pred_check_branch
      %174 = sbr.rel (%p171) target = $region32
    $region31: #{_encoder_forward.6} parent=5 // pred_region
      %s175 = ssub.s32 %s9, 1
      %s176 = smul.u32 8, %s19
      %p177 = scmp.lt.s32.totalorder %s176, 7
      %s178 = scalar_select %p177, %s176, 7
      %s179 = smul.addr %s178, 4
      %s180 = scalar_lea.vmem %s0, %s179
      %p181 = pneg %p47
      %p182 = pneg %p44
      %p183 = scmp.lt.s32.totalorder %s18, 1
      %s184 = scalar_select %p183, %s18, 1
      %s185 = smul.addr %s184, 8
      %s186 = smul.addr %s185, 4
      %s187 = scalar_lea.vmem %s1, %s186
      %p188 = pneg %p73
      %p189 = pneg %p70
      %p190 = scmp.lt.s32.totalorder %s18, 1
      %s191 = scalar_select %p190, %s18, 1
      %s192 = scalar_lea.vmem %s2, %s191
      %p193 = pneg %p99
      %p194 = pneg %p96
      %p195 = pneg %p127
      %p196 = pneg %p124
      %s197 = smul.u32 8, %s19
      %p198 = scmp.lt.s32.totalorder %s18, 1
      %s199 = scalar_select %p198, %s18, 1
      %p200 = scmp.lt.s32.totalorder %s197, 7
      %s201 = scalar_select %p200, %s197, 7
      %s202 = smul.addr %s199, 8
      %s203 = sadd.s32 %s201, %s202
      %s204 = smul.addr %s203, 8
      %s205 = scalar_lea.vmem %s3, %s204
      %s206 = smul.u32 8, %s19
      %p207 = scmp.lt.s32.totalorder %s206, 7
      %s208 = scalar_select %p207, %s206, 7
      %s209 = smul.addr %s208, 4
      %s210 = scalar_lea.vmem %s0, %s209
      %s211 = smul.u32 8, %s19
      %p212 = scmp.lt.s32.totalorder %s18, 1
      %s213 = scalar_select %p212, %s18, 1
      %s214 = smul.addr %s213, 8
      %s215 = smul.addr %s214, 4
      %s216 = scalar_lea.vmem %s1, %s215
      %p217 = scmp.lt.s32.totalorder %s18, 1
      %s218 = scalar_select %p217, %s18, 1
      %s219 = scalar_lea.vmem %s2, %s218
      %s220 = smul.u32 8, %s19
      %p221 = scmp.lt.s32.totalorder %s18, 1
      %s222 = scalar_select %p221, %s18, 1
      %p223 = scmp.lt.s32.totalorder %s220, 7
      %s224 = scalar_select %p223, %s220, 7
      %s225 = smul.addr %s222, 8
      %s226 = sadd.s32 %s224, %s225
      %s227 = smul.addr %s226, 8
      %s228 = scalar_lea.vmem %s3, %s227
      %s229 = smul.u32 8, %s19
      %v231 = vld [vmem:[%s210] sm:$0xf]
      %v232 = vld [vmem:[%s210 + $0x4] sm:$0xf]
      %v233 = vld [vmem:[%s210 + $0x8] sm:$0xf]
      %v234 = vld [vmem:[%s210 + $0xc] sm:$0xf]
      %v235 = vld [vmem:[%s210 + $0x10] sm:$0xf]
      %v236 = vld [vmem:[%s210 + $0x14] sm:$0xf]
      %v237 = vld [vmem:[%s210 + $0x18] sm:$0xf]
      %v238 = vld [vmem:[%s210 + $0x1c] sm:$0xf]
      %v239 = vld [vmem:[%s216] sm:$0xf]
      %v240 = vld [vmem:[%s216 + $0x4] sm:$0xf]
      %v241 = vld [vmem:[%s216 + $0x8] sm:$0xf]
      %v242 = vld [vmem:[%s216 + $0xc] sm:$0xf]
      %s243 = scalar_lea.vmem %s210, 32
      %v244 = vld [vmem:[%s243] sm:$0xf]
      %v245 = vld [vmem:[%s243 + $0x4] sm:$0xf]
      %v246 = vld [vmem:[%s243 + $0x8] sm:$0xf]
      %v247 = vld [vmem:[%s243 + $0xc] sm:$0xf]
      %v248 = vld [vmem:[%s243 + $0x10] sm:$0xf]
      %v249 = vld [vmem:[%s243 + $0x14] sm:$0xf]
      %v250 = vld [vmem:[%s243 + $0x18] sm:$0xf]
      %v251 = vld [vmem:[%s243 + $0x1c] sm:$0xf]
      %s252 = scalar_lea.vmem %s216, 16
      %v253 = vld [vmem:[%s252] sm:$0xf]
      %v254 = vld [vmem:[%s252 + $0x4] sm:$0xf]
      %v255 = vld [vmem:[%s252 + $0x8] sm:$0xf]
      %v256 = vld [vmem:[%s252 + $0xc] sm:$0xf]
      %v265 = vunpack.c.l.b16 %v244
      %v266 = vunpack.c.l.b16 %v245
      %v267 = vunpack.c.l.b16 %v246
      %v268 = vunpack.c.l.b16 %v247
      %v269 = vunpack.c.l.b16 %v248
      %v270 = vunpack.c.l.b16 %v249
      %v271 = vunpack.c.l.b16 %v250
      %v272 = vunpack.c.l.b16 %v251
      %v273 = vpack.c.b16 %v266, %v265
      %v274 = vpack.c.b16 %v268, %v267
      %v275 = vpack.c.b16 %v270, %v269
      %v276 = vpack.c.b16 %v272, %v271
      %v281 = vunpack.c.l.b16 %v253
      %v282 = vunpack.c.l.b16 %v254
      %v283 = vunpack.c.l.b16 %v255
      %v284 = vunpack.c.l.b16 %v256
      %v285 = vpack.c.b16 %v282, %v281
      %v286 = vpack.c.b16 %v284, %v283
      %vm289 = vcmask 261120
      %v291 = vsel %vm289, %v273, 0
      %v294 = vsel %vm289, %v274, 0
      %v297 = vsel %vm289, %v275, 0
      %v300 = vsel %vm289, %v276, 0
      %302 = vmatprep.subr.bf16.mxu0 0
      %303 = vmatpush1.bf16.msra.mxu0 %v285
      %304 = vmatprep.subr.bf16.mxu0 0
      %305 = vmatpush1.bf16.msra.mxu0 %v286
      %306 = vmatprep.subr.bf16.mxu0 0
      %307 = vmatpush1.bf16.msra.mxu0 0
      %308 = vmatprep.subr.bf16.mxu0 0
      %309 = vmatpush1.bf16.msra.mxu0 0
      %310 = vmatprep.subr.bf16.mxu0 0
      %311 = vmatpush1.bf16.msra.mxu0 0
      %312 = vmatprep.subr.bf16.mxu0 0
      %313 = vmatpush1.bf16.msra.mxu0 0
      %314 = vmatprep.subr.bf16.mxu0 0
      %315 = vmatpush1.bf16.msra.mxu0 0
      %316 = vmatprep.subr.bf16.mxu0 0
      %317 = vmatpush1.bf16.msra.mxu0 0
      %318 = vmatprep.subr.bf16.mxu0 0
      %319 = vmatpush1.bf16.msra.mxu0 0
      %320 = vmatprep.subr.bf16.mxu0 0
      %321 = vmatpush1.bf16.msra.mxu0 0
      %322 = vmatprep.subr.bf16.mxu0 0
      %323 = vmatpush1.bf16.msra.mxu0 0
      %324 = vmatprep.subr.bf16.mxu0 0
      %325 = vmatpush1.bf16.msra.mxu0 0
      %326 = vmatprep.subr.bf16.mxu0 0
      %327 = vmatpush1.bf16.msra.mxu0 0
      %328 = vmatprep.subr.bf16.mxu0 0
      %329 = vmatpush1.bf16.msra.mxu0 0
      %330 = vmatprep.subr.bf16.mxu0 0
      %331 = vmatpush1.bf16.msra.mxu0 0
      %332 = vmatprep.subr.bf16.mxu0 0
      %333 = vmatpush1.bf16.msra.mxu0 0
      %334 = vmatprep.mubr.bf16.mxu0 0
      %335 = vmatmul.mubr.bf16.gmra.mrb[0].mxu0 %v291
      %v336 = vpop.f32.mrb[0].mxu0
      %v337 = vadd.f32 0.0, %v336
      %v338 = vpop.f32.mrb[0].mxu0
      %v339 = vpop.f32.mrb[0].mxu0
      %v340 = vadd.f32 0.0, %v339
      %v341 = vpop.f32.mrb[0].mxu0
      %342 = vmatprep.mubr.bf16.mxu0 0
      %343 = vmatmul.mubr.bf16.gmra.mrb[0].mxu0 %v294
      %v344 = vpop.f32.mrb[0].mxu0
      %v345 = vadd.f32 0.0, %v344
      %v346 = vpop.f32.mrb[0].mxu0
      %v347 = vpop.f32.mrb[0].mxu0
      %v348 = vadd.f32 0.0, %v347
      %v349 = vpop.f32.mrb[0].mxu0
      %350 = vmatprep.mubr.bf16.mxu0 0
      %351 = vmatmul.mubr.bf16.gmra.mrb[0].mxu0 %v297
      %v352 = vpop.f32.mrb[0].mxu0
      %v353 = vadd.f32 0.0, %v352
      %v354 = vpop.f32.mrb[0].mxu0
      %v355 = vpop.f32.mrb[0].mxu0
      %v356 = vadd.f32 0.0, %v355
      %v357 = vpop.f32.mrb[0].mxu0
      %358 = vmatprep.mubr.bf16.mxu0 0
      %359 = vmatmul.mubr.bf16.gmra.mrb[0].mxu0 %v300
      %v360 = vpop.f32.mrb[0].mxu0
      %v361 = vadd.f32 0.0, %v360
      %v362 = vpop.f32.mrb[0].mxu0
      %v363 = vpop.f32.mrb[0].mxu0
      %v364 = vadd.f32 0.0, %v363
      %v365 = vpop.f32.mrb[0].mxu0
      %366 = vdwg.mxu0
      %v375 = vunpack.c.l.b16 %v231
      %v376 = vunpack.c.l.b16 %v232
      %v377 = vunpack.c.l.b16 %v233
      %v378 = vunpack.c.l.b16 %v234
      %v379 = vunpack.c.l.b16 %v235
      %v380 = vunpack.c.l.b16 %v236
      %v381 = vunpack.c.l.b16 %v237
      %v382 = vunpack.c.l.b16 %v238
      %v383 = vpack.c.b16 %v376, %v375
      %v384 = vpack.c.b16 %v378, %v377
      %v385 = vpack.c.b16 %v380, %v379
      %v386 = vpack.c.b16 %v382, %v381
      %v391 = vunpack.c.l.b16 %v239
      %v392 = vunpack.c.l.b16 %v240
      %v393 = vunpack.c.l.b16 %v241
      %v394 = vunpack.c.l.b16 %v242
      %v395 = vpack.c.b16 %v392, %v391
      %v396 = vpack.c.b16 %v394, %v393
      %v400 = vsel %vm289, %v383, 0
      %v403 = vsel %vm289, %v384, 0
      %v406 = vsel %vm289, %v385, 0
      %v409 = vsel %vm289, %v386, 0
      %411 = vmatprep.subr.bf16.mxu0 0
      %412 = vmatpush1.bf16.msra.mxu0 %v395
      %413 = vmatprep.subr.bf16.mxu0 0
      %414 = vmatpush1.bf16.msra.mxu0 %v396
      %415 = vmatprep.subr.bf16.mxu0 0
      %416 = vmatpush1.bf16.msra.mxu0 0
      %417 = vmatprep.subr.bf16.mxu0 0
      %418 = vmatpush1.bf16.msra.mxu0 0
      %419 = vmatprep.subr.bf16.mxu0 0
      %420 = vmatpush1.bf16.msra.mxu0 0
      %421 = vmatprep.subr.bf16.mxu0 0
      %422 = vmatpush1.bf16.msra.mxu0 0
      %423 = vmatprep.subr.bf16.mxu0 0
      %424 = vmatpush1.bf16.msra.mxu0 0
      %425 = vmatprep.subr.bf16.mxu0 0
      %426 = vmatpush1.bf16.msra.mxu0 0
      %427 = vmatprep.subr.bf16.mxu0 0
      %428 = vmatpush1.bf16.msra.mxu0 0
      %429 = vmatprep.subr.bf16.mxu0 0
      %430 = vmatpush1.bf16.msra.mxu0 0
      %431 = vmatprep.subr.bf16.mxu0 0
      %432 = vmatpush1.bf16.msra.mxu0 0
      %433 = vmatprep.subr.bf16.mxu0 0
      %434 = vmatpush1.bf16.msra.mxu0 0
      %435 = vmatprep.subr.bf16.mxu0 0
      %436 = vmatpush1.bf16.msra.mxu0 0
      %437 = vmatprep.subr.bf16.mxu0 0
      %438 = vmatpush1.bf16.msra.mxu0 0
      %439 = vmatprep.subr.bf16.mxu0 0
      %440 = vmatpush1.bf16.msra.mxu0 0
      %441 = vmatprep.subr.bf16.mxu0 0
      %442 = vmatpush1.bf16.msra.mxu0 0
      %443 = vmatprep.mubr.bf16.mxu0 0
      %444 = vmatmul.mubr.bf16.gmra.mrb[0].mxu0 %v400
      %v445 = vpop.f32.mrb[0].mxu0
      %v446 = vadd.f32 %v337, %v445
      %v447 = vpop.f32.mrb[0].mxu0
      %v448 = vpop.f32.mrb[0].mxu0
      %v449 = vadd.f32 %v340, %v448
      %v450 = vpop.f32.mrb[0].mxu0
      %451 = vmatprep.mubr.bf16.mxu0 0
      %452 = vmatmul.mubr.bf16.gmra.mrb[0].mxu0 %v403
      %v453 = vpop.f32.mrb[0].mxu0
      %v454 = vadd.f32 %v345, %v453
      %v455 = vpop.f32.mrb[0].mxu0
      %v456 = vpop.f32.mrb[0].mxu0
      %v457 = vadd.f32 %v348, %v456
      %v458 = vpop.f32.mrb[0].mxu0
      %459 = vmatprep.mubr.bf16.mxu0 0
      %460 = vmatmul.mubr.bf16.gmra.mrb[0].mxu0 %v406
      %v461 = vpop.f32.mrb[0].mxu0
      %v462 = vadd.f32 %v353, %v461
      %v463 = vpop.f32.mrb[0].mxu0
      %v464 = vpop.f32.mrb[0].mxu0
      %v465 = vadd.f32 %v356, %v464
      %v466 = vpop.f32.mrb[0].mxu0
      %467 = vmatprep.mubr.bf16.mxu0 0
      %468 = vmatmul.mubr.bf16.gmra.mrb[0].mxu0 %v409
      %v469 = vpop.f32.mrb[0].mxu0
      %v470 = vadd.f32 %v361, %v469
      %v471 = vpop.f32.mrb[0].mxu0
      %v472 = vpop.f32.mrb[0].mxu0
      %v473 = vadd.f32 %v364, %v472
      %v474 = vpop.f32.mrb[0].mxu0
      %475 = vdwg.mxu0
      %v476 = vld [vmem:[%s219] sm:$0x1]
      %v478 = vlaneseq
      %v479 = vshrl.u32 %v478, 7
      %v480 = vsub.s32 0, %v479
      %v481 = vrot.slane %v476, %v480
      %v483 = vadd.f32 %v446, %v481
      %v484 = vadd.f32 %v449, %v481
      %v485 = vadd.f32 %v454, %v481
      %v486 = vadd.f32 %v457, %v481
      %v487 = vadd.f32 %v462, %v481
      %v488 = vadd.f32 %v465, %v481
      %v489 = vadd.f32 %v470, %v481
      %v490 = vadd.f32 %v473, %v481
      %vm491 = vcmask 785408
      %492 = vst.msk [vmem:[%s228] sm:$0xff] %vm491, %v483
      %493 = vst.msk [vmem:[%s228 + $0x8] sm:$0xff] %vm491, %v484
      %494 = vst.msk [vmem:[%s228 + $0x10] sm:$0xff] %vm491, %v485
      %495 = vst.msk [vmem:[%s228 + $0x18] sm:$0xff] %vm491, %v486
      %496 = vst.msk [vmem:[%s228 + $0x20] sm:$0xff] %vm491, %v487
      %497 = vst.msk [vmem:[%s228 + $0x28] sm:$0xff] %vm491, %v488
      %498 = vst.msk [vmem:[%s228 + $0x30] sm:$0xff] %vm491, %v489
      %499 = vst.msk [vmem:[%s228 + $0x38] sm:$0xff] %vm491, %v490
      %s500 = smul.u32 8, %s19
      %p501 = scmp.lt.s32.totalorder %s18, 1
      %s502 = scalar_select %p501, %s18, 1
      %p503 = scmp.lt.s32.totalorder %s500, 7
      %s504 = scalar_select %p503, %s500, 7
      %s505 = smul.addr %s502, 8
      %s506 = sadd.s32 %s504, %s505
      %s507 = smul.addr %s506, 8
      %s508 = scalar_lea.vmem %s3, %s507
      // Predicated region
      $region33: #{_encoder_forward.6} parent=31 // pred_check
        %p509 = pneg %p124
      $region34: #{_encoder_forward.6} parent=31 // pred_check_branch
        %511 = sbr.rel (%p509) target = $region36
      $region35: #{_encoder_forward.6} parent=31 // pred_region
        %s512 = smul.u32 8, %s19
      $region36: #{_encoder_forward.6} parent=31 // pred_fallthru
        _
    $region32: #{_encoder_forward.6} parent=5 // pred_fallthru
      _
    %p513 = scmp.le.s32.totalorder 2, %s9
    // Predicated region
    $region37: #{_encoder_forward.6} parent=5 // pred_check
      %p514 = pneg %p513
    $region38: #{_encoder_forward.6} parent=5 // pred_check_branch
      %516 = sbr.rel (%p514) target = $region40
    $region39: #{_encoder_forward.6} parent=5 // pred_region
      %s517 = ssub.s32 %s9, 2
      // Predicated region
      $region41: #{_encoder_forward.6} parent=39 // pred_check
        %p518 = pneg %p130
      $region42: #{_encoder_forward.6} parent=39 // pred_check_branch
        %520 = sbr.rel (%p518) target = $region44
      $region43: #{_encoder_forward.6} parent=39 // pred_region
        %s521 = smul.u32 8, %s21
        %p522 = scmp.lt.s32.totalorder %s20, 1
        %s523 = scalar_select %p522, %s20, 1
        %p524 = scmp.lt.s32.totalorder %s521, 7
        %s525 = scalar_select %p524, %s521, 7
        %s526 = smul.addr %s523, 8
        %s527 = sadd.s32 %s525, %s526
        %s528 = smul.addr %s527, 8
        %s529 = scalar_lea.vmem %s3, %s528
      $region44: #{_encoder_forward.6} parent=39 // pred_fallthru
        _
    $region40: #{_encoder_forward.6} parent=5 // pred_fallthru
      _
  $region6: #{_encoder_forward.6} parent=0 // loop_footer
    %s13 = sadd.s32 1, %s9
  $region7: #{_encoder_forward.6} parent=0 // loop_footer_branch
    %8 = sbr.rel target = $region3
  $region8: #{_encoder_forward.6} parent=0 // loop_exit
    _

// kernel: _encoder_forward.4
$region0: #{_encoder_forward.4}
  #allocation0 [shape = 'u32[]', space=smem, size = 0x4, offset = 0x4, fixed_abs, tag = 'smem constant byte address 0x4 - core index']
  #allocation1 [shape = 'u32[144,128]{1,0:T(1,128)}', space=vmem, size = 0x12000, scoped, tag = 'internal scratch']
  %s0 = inlined_call_operand.vmem [shape: bf16[1,64,32], index: 0, kind: input, shape index: {}]
  %s1 = inlined_call_operand.vmem [shape: bf16[2,1,32,96], index: 1, kind: input, shape index: {}]
  %s2 = inlined_call_operand.vmem [shape: f32[2,1,96], index: 2, kind: input, shape index: {}]
  %s3 = inlined_call_operand.vmem [shape: f32[2,64,96], index: 3, kind: output, shape index: {}]
  %s4 = sld [smem:[#allocation0]]
  $region45: #{_encoder_forward.4} parent=0
    _
  %s6 = ssub.s32 1, %s4
  %s7 = scalar_select 0, %s6, %s4
  loop: start=0, step=1, limit=4
  $region2: #{_encoder_forward.4} parent=0 // loop_pre_header
    _
  $region3: #{_encoder_forward.4} parent=0 // loop_header
    %s9 = sphi 0, %s13
    %p10 = scmp.ge.s32.totalorder %s9, 4
    %s16 = sphi 0, %s28
    %s17 = sphi 0, %s24
    %s18 = sphi 0, %s16
    %s19 = sphi 0, %s17
    %s20 = sphi 0, %s18
    %s21 = sphi 0, %s19
    %s31 = sphi 0, %s33
    %s34 = sphi 0, %s31
    %s35 = sphi 0, %s34
    %s51 = sphi 0, %s35
    %s57 = sphi 0, %s59
    %s60 = sphi 0, %s57
    %s61 = sphi 0, %s60
    %s77 = sphi 0, %s61
    %s83 = sphi 0, %s85
    %s86 = sphi 0, %s83
    %s87 = sphi 0, %s86
    %s103 = sphi 0, %s87
    %s111 = sphi 0, %s113
    %s114 = sphi 0, %s111
    %s115 = sphi 0, %s114
    %s131 = sphi 0, %s115
  $region4: #{_encoder_forward.4} parent=0 // loop_header_branch
    %12 = sbr.rel (%p10) target = $region8
  $region5: #{_encoder_forward.4} parent=0 // loop_body
    %s14 = ssub.s32 %s9, 1
    %s15 = ssub.s32 %s9, 2
    %s22 = sadd.s32 1, %s17
    %p23 = scmp.ge.s32.totalorder %s22, 1
    %s24 = scalar_select %p23, 0, %s22
    %s25 = sadd.s32 1, %s16
    %s26 = scalar_select %p23, %s25, %s16
    %p27 = scmp.ge.s32.totalorder %s26, 2
    %s28 = scalar_select %p27, 0, %s26
    %s29 = ssub.s32 %s17, %s24
    %p30 = scmp.eq.s32.totalorder %s29, 0
    %s32 = sadd.s32 %s31, 1
    %s33 = scalar_select %p30, %s31, %s32
    %p36 = pneg %p30
    %p37 = scmp.eq.s32.totalorder %s9, 1
    %p38 = por %p36, %p37
    %p39 = scmp.ne.s32.totalorder %s31, %s34
    %p40 = scmp.eq.s32.totalorder %s9, 0
    %p41 = por %p39, %p40
    %p42 = scmp.ne.s32.totalorder %s31, %s34
    %p43 = scmp.eq.s32.totalorder %s14, 1
    %p44 = por %p42, %p43
    %p45 = scmp.ne.s32.totalorder %s34, %s35
    %p46 = scmp.eq.s32.totalorder %s14, 0
    %p47 = por %p45, %p46
    %p48 = scmp.ne.s32.totalorder %s34, %s35
    %p49 = scmp.eq.s32.totalorder %s15, 1
    %p50 = por %p48, %p49
    %p52 = scmp.ne.s32.totalorder %s35, %s51
    %p53 = scmp.eq.s32.totalorder %s15, 0
    %p54 = por %p52, %p53
    %s55 = ssub.s32 %s16, %s28
    %p56 = scmp.eq.s32.totalorder %s55, 0
    %s58 = sadd.s32 %s57, 1
    %s59 = scalar_select %p56, %s57, %s58
    %p62 = pneg %p56
    %p63 = scmp.eq.s32.totalorder %s9, 1
    %p64 = por %p62, %p63
    %p65 = scmp.ne.s32.totalorder %s57, %s60
    %p66 = scmp.eq.s32.totalorder %s9, 0
    %p67 = por %p65, %p66
    %p68 = scmp.ne.s32.totalorder %s57, %s60
    %p69 = scmp.eq.s32.totalorder %s14, 1
    %p70 = por %p68, %p69
    %p71 = scmp.ne.s32.totalorder %s60, %s61
    %p72 = scmp.eq.s32.totalorder %s14, 0
    %p73 = por %p71, %p72
    %p74 = scmp.ne.s32.totalorder %s60, %s61
    %p75 = scmp.eq.s32.totalorder %s15, 1
    %p76 = por %p74, %p75
    %p78 = scmp.ne.s32.totalorder %s61, %s77
    %p79 = scmp.eq.s32.totalorder %s15, 0
    %p80 = por %p78, %p79
    %s81 = ssub.s32 %s16, %s28
    %p82 = scmp.eq.s32.totalorder %s81, 0
    %s84 = sadd.s32 %s83, 1
    %s85 = scalar_select %p82, %s83, %s84
    %p88 = pneg %p82
    %p89 = scmp.eq.s32.totalorder %s9, 1
    %p90 = por %p88, %p89
    %p91 = scmp.ne.s32.totalorder %s83, %s86
    %p92 = scmp.eq.s32.totalorder %s9, 0
    %p93 = por %p91, %p92
    %p94 = scmp.ne.s32.totalorder %s83, %s86
    %p95 = scmp.eq.s32.totalorder %s14, 1
    %p96 = por %p94, %p95
    %p97 = scmp.ne.s32.totalorder %s86, %s87
    %p98 = scmp.eq.s32.totalorder %s14, 0
    %p99 = por %p97, %p98
    %p100 = scmp.ne.s32.totalorder %s86, %s87
    %p101 = scmp.eq.s32.totalorder %s15, 1
    %p102 = por %p100, %p101
    %p104 = scmp.ne.s32.totalorder %s87, %s103
    %p105 = scmp.eq.s32.totalorder %s15, 0
    %p106 = por %p104, %p105
    %s107 = ssub.s32 %s16, %s28
    %s108 = ssub.s32 %s17, %s24
    %s109 = sor.u32 %s107, %s108
    %p110 = scmp.eq.s32.totalorder %s109, 0
    %s112 = sadd.s32 %s111, 1
    %s113 = scalar_select %p110, %s111, %s112
    %p116 = pneg %p110
    %p117 = scmp.eq.s32.totalorder %s9, 1
    %p118 = por %p116, %p117
    %p119 = scmp.ne.s32.totalorder %s111, %s114
    %p120 = scmp.eq.s32.totalorder %s9, 0
    %p121 = por %p119, %p120
    %p122 = scmp.ne.s32.totalorder %s111, %s114
    %p123 = scmp.eq.s32.totalorder %s14, 1
    %p124 = por %p122, %p123
    %p125 = scmp.ne.s32.totalorder %s114, %s115
    %p126 = scmp.eq.s32.totalorder %s14, 0
    %p127 = por %p125, %p126
    %p128 = scmp.ne.s32.totalorder %s114, %s115
    %p129 = scmp.eq.s32.totalorder %s15, 1
    %p130 = por %p128, %p129
    %p132 = scmp.ne.s32.totalorder %s115, %s131
    %p133 = scmp.eq.s32.totalorder %s15, 0
    %p134 = por %p132, %p133
    %p135 = scmp.le.s32.totalorder 1, %s9
    %p136 = scmp.lt.s32.totalorder %s9, 3
    %p137 = pnand %p135, %p136
    %p138 = pneg %p137
    // Predicated region
    $region9: #{_encoder_forward.4} parent=5 // pred_check
      _
    $region10: #{_encoder_forward.4} parent=5 // pred_check_branch
      %140 = sbr.rel (%p137) target = $region12
    $region11: #{_encoder_forward.4} parent=5 // pred_region
      %s141 = ssub.s32 %s9, 1
      // Predicated region
      $region13: #{_encoder_forward.4} parent=11 // pred_check
        %p142 = pneg %p47
      $region14: #{_encoder_forward.4} parent=11 // pred_check_branch
        %144 = sbr.rel (%p142) target = $region16
      $region15: #{_encoder_forward.4} parent=11 // pred_region
        %s145 = smul.u32 8, %s19
        %p146 = scmp.lt.s32.totalorder %s145, 7
        %s147 = scalar_select %p146, %s145, 7
        %s148 = smul.addr %s147, 4
        %s149 = scalar_lea.vmem %s0, %s148
        %s150 = smul.u32 8, %s19
      $region16: #{_encoder_forward.4} parent=11 // pred_fallthru
        _
    $region12: #{_encoder_forward.4} parent=5 // pred_fallthru
      _
    %p151 = scmp.lt.s32.totalorder %s9, 2
    // Predicated region
    $region17: #{_encoder_forward.4} parent=5 // pred_check
      %p152 = pneg %p151
    $region18: #{_encoder_forward.4} parent=5 // pred_check_branch
      %154 = sbr.rel (%p152) target = $region20
    $region19: #{_encoder_forward.4} parent=5 // pred_region
      // Predicated region
      $region21: #{_encoder_forward.4} parent=19 // pred_check
        %p155 = pneg %p67
      $region22: #{_encoder_forward.4} parent=19 // pred_check_branch
        %157 = sbr.rel (%p155) target = $region24
      $region23: #{_encoder_forward.4} parent=19 // pred_region
        %p158 = scmp.lt.s32.totalorder %s16, 1
        %s159 = scalar_select %p158, %s16, 1
        %s160 = smul.addr %s159, 4
        %s161 = smul.addr %s160, 4
        %s162 = scalar_lea.vmem %s1, %s161
      $region24: #{_encoder_forward.4} parent=19 // pred_fallthru
        _
      // Predicated region
      $region25: #{_encoder_forward.4} parent=19 // pred_check
        %p163 = pneg %p93
      $region26: #{_encoder_forward.4} parent=19 // pred_check_branch
        %165 = sbr.rel (%p163) target = $region28
      $region27: #{_encoder_forward.4} parent=19 // pred_region
        %p166 = scmp.lt.s32.totalorder %s16, 1
        %s167 = scalar_select %p166, %s16, 1
        %s168 = scalar_lea.vmem %s2, %s167
      $region28: #{_encoder_forward.4} parent=19 // pred_fallthru
        _
    $region20: #{_encoder_forward.4} parent=5 // pred_fallthru
      _
    %p169 = scmp.le.s32.totalorder 1, %s9
    %p170 = scmp.lt.s32.totalorder %s9, 3
    %p171 = pnand %p169, %p170
    %p172 = pneg %p171
    // Predicated region
    $region29: #{_encoder_forward.4} parent=5 // pred_check
      _
    $region30: #{_encoder_forward.4} parent=5 // pred_check_branch
      %174 = sbr.rel (%p171) target = $region32
    $region31: #{_encoder_forward.4} parent=5 // pred_region
      %s175 = ssub.s32 %s9, 1
      %s176 = smul.u32 8, %s19
      %p177 = scmp.lt.s32.totalorder %s176, 7
      %s178 = scalar_select %p177, %s176, 7
      %s179 = smul.addr %s178, 4
      %s180 = scalar_lea.vmem %s0, %s179
      %p181 = pneg %p47
      %p182 = pneg %p44
      %p183 = scmp.lt.s32.totalorder %s18, 1
      %s184 = scalar_select %p183, %s18, 1
      %s185 = smul.addr %s184, 4
      %s186 = smul.addr %s185, 4
      %s187 = scalar_lea.vmem %s1, %s186
      %p188 = pneg %p73
      %p189 = pneg %p70
      %p190 = scmp.lt.s32.totalorder %s18, 1
      %s191 = scalar_select %p190, %s18, 1
      %s192 = scalar_lea.vmem %s2, %s191
      %p193 = pneg %p99
      %p194 = pneg %p96
      %p195 = pneg %p127
      %p196 = pneg %p124
      %s197 = smul.u32 8, %s19
      %p198 = scmp.lt.s32.totalorder %s18, 1
      %s199 = scalar_select %p198, %s18, 1
      %p200 = scmp.lt.s32.totalorder %s197, 7
      %s201 = scalar_select %p200, %s197, 7
      %s202 = smul.addr %s199, 8
      %s203 = sadd.s32 %s201, %s202
      %s204 = smul.addr %s203, 8
      %s205 = scalar_lea.vmem %s3, %s204
      %s206 = smul.u32 8, %s19
      %p207 = scmp.lt.s32.totalorder %s206, 7
      %s208 = scalar_select %p207, %s206, 7
      %s209 = smul.addr %s208, 4
      %s210 = scalar_lea.vmem %s0, %s209
      %s211 = smul.u32 8, %s19
      %p212 = scmp.lt.s32.totalorder %s18, 1
      %s213 = scalar_select %p212, %s18, 1
      %s214 = smul.addr %s213, 4
      %s215 = smul.addr %s214, 4
      %s216 = scalar_lea.vmem %s1, %s215
      %p217 = scmp.lt.s32.totalorder %s18, 1
      %s218 = scalar_select %p217, %s18, 1
      %s219 = scalar_lea.vmem %s2, %s218
      %s220 = smul.u32 8, %s19
      %p221 = scmp.lt.s32.totalorder %s18, 1
      %s222 = scalar_select %p221, %s18, 1
      %p223 = scmp.lt.s32.totalorder %s220, 7
      %s224 = scalar_select %p223, %s220, 7
      %s225 = smul.addr %s222, 8
      %s226 = sadd.s32 %s224, %s225
      %s227 = smul.addr %s226, 8
      %s228 = scalar_lea.vmem %s3, %s227
      %s229 = smul.u32 8, %s19
      %v231 = vld [vmem:[%s210] sm:$0xf]
      %v232 = vld [vmem:[%s210 + $0x4] sm:$0xf]
      %v233 = vld [vmem:[%s210 + $0x8] sm:$0xf]
      %v234 = vld [vmem:[%s210 + $0xc] sm:$0xf]
      %v235 = vld [vmem:[%s210 + $0x10] sm:$0xf]
      %v236 = vld [vmem:[%s210 + $0x14] sm:$0xf]
      %v237 = vld [vmem:[%s210 + $0x18] sm:$0xf]
      %v238 = vld [vmem:[%s210 + $0x1c] sm:$0xf]
      %v239 = vld [vmem:[%s216] sm:$0xf]
      %v240 = vld [vmem:[%s216 + $0x4] sm:$0xf]
      %v241 = vld [vmem:[%s216 + $0x8] sm:$0xf]
      %v242 = vld [vmem:[%s216 + $0xc] sm:$0xf]
      %v243 = vld [vmem:[%s219] sm:$0x1]
      %v245 = vlaneseq
      %v246 = vshrl.u32 %v245, 7
      %v247 = vsub.s32 0, %v246
      %v248 = vrot.slane %v243, %v247
      %v258 = vunpack.c.l.b16 %v231
      %v259 = vunpack.c.l.b16 %v232
      %v260 = vunpack.c.l.b16 %v233
      %v261 = vunpack.c.l.b16 %v234
      %v262 = vunpack.c.l.b16 %v235
      %v263 = vunpack.c.l.b16 %v236
      %v264 = vunpack.c.l.b16 %v237
      %v265 = vunpack.c.l.b16 %v238
      %v266 = vpack.c.b16 %v259, %v258
      %v267 = vpack.c.b16 %v261, %v260
      %v268 = vpack.c.b16 %v263, %v262
      %v269 = vpack.c.b16 %v265, %v264
      %v274 = vunpack.c.l.b16 %v239
      %v275 = vunpack.c.l.b16 %v240
      %v276 = vunpack.c.l.b16 %v241
      %v277 = vunpack.c.l.b16 %v242
      %v278 = vpack.c.b16 %v275, %v274
      %v279 = vpack.c.b16 %v277, %v276
      %vm282 = vcmask 261120
      %v284 = vsel %vm282, %v266, 0
      %v287 = vsel %vm282, %v267, 0
      %v290 = vsel %vm282, %v268, 0
      %v293 = vsel %vm282, %v269, 0
      %295 = vmatprep.subr.bf16.mxu0 0
      %296 = vmatpush1.bf16.msra.mxu0 %v278
      %297 = vmatprep.subr.bf16.mxu0 0
      %298 = vmatpush1.bf16.msra.mxu0 %v279
      %299 = vmatprep.subr.bf16.mxu0 0
      %300 = vmatpush1.bf16.msra.mxu0 0
      %301 = vmatprep.subr.bf16.mxu0 0
      %302 = vmatpush1.bf16.msra.mxu0 0
      %303 = vmatprep.subr.bf16.mxu0 0
      %304 = vmatpush1.bf16.msra.mxu0 0
      %305 = vmatprep.subr.bf16.mxu0 0
      %306 = vmatpush1.bf16.msra.mxu0 0
      %307 = vmatprep.subr.bf16.mxu0 0
      %308 = vmatpush1.bf16.msra.mxu0 0
      %309 = vmatprep.subr.bf16.mxu0 0
      %310 = vmatpush1.bf16.msra.mxu0 0
      %311 = vmatprep.subr.bf16.mxu0 0
      %312 = vmatpush1.bf16.msra.mxu0 0
      %313 = vmatprep.subr.bf16.mxu0 0
      %314 = vmatpush1.bf16.msra.mxu0 0
      %315 = vmatprep.subr.bf16.mxu0 0
      %316 = vmatpush1.bf16.msra.mxu0 0
      %317 = vmatprep.subr.bf16.mxu0 0
      %318 = vmatpush1.bf16.msra.mxu0 0
      %319 = vmatprep.subr.bf16.mxu0 0
      %320 = vmatpush1.bf16.msra.mxu0 0
      %321 = vmatprep.subr.bf16.mxu0 0
      %322 = vmatpush1.bf16.msra.mxu0 0
      %323 = vmatprep.subr.bf16.mxu0 0
      %324 = vmatpush1.bf16.msra.mxu0 0
      %325 = vmatprep.subr.bf16.mxu0 0
      %326 = vmatpush1.bf16.msra.mxu0 0
      %327 = vmatprep.mubr.bf16.mxu0 0
      %328 = vmatmul.mubr.bf16.gmra.mrb[0].mxu0 %v284
      %v329 = vpop.f32.mrb[0].mxu0
      %v330 = vadd.f32 %v248, %v329
      %v331 = vpop.f32.mrb[0].mxu0
      %v332 = vpop.f32.mrb[0].mxu0
      %v333 = vadd.f32 %v248, %v332
      %v334 = vpop.f32.mrb[0].mxu0
      %335 = vmatprep.mubr.bf16.mxu0 0
      %336 = vmatmul.mubr.bf16.gmra.mrb[0].mxu0 %v287
      %v337 = vpop.f32.mrb[0].mxu0
      %v338 = vadd.f32 %v248, %v337
      %v339 = vpop.f32.mrb[0].mxu0
      %v340 = vpop.f32.mrb[0].mxu0
      %v341 = vadd.f32 %v248, %v340
      %v342 = vpop.f32.mrb[0].mxu0
      %343 = vmatprep.mubr.bf16.mxu0 0
      %344 = vmatmul.mubr.bf16.gmra.mrb[0].mxu0 %v290
      %v345 = vpop.f32.mrb[0].mxu0
      %v346 = vadd.f32 %v248, %v345
      %v347 = vpop.f32.mrb[0].mxu0
      %v348 = vpop.f32.mrb[0].mxu0
      %v349 = vadd.f32 %v248, %v348
      %v350 = vpop.f32.mrb[0].mxu0
      %351 = vmatprep.mubr.bf16.mxu0 0
      %352 = vmatmul.mubr.bf16.gmra.mrb[0].mxu0 %v293
      %v353 = vpop.f32.mrb[0].mxu0
      %v354 = vadd.f32 %v248, %v353
      %v355 = vpop.f32.mrb[0].mxu0
      %v356 = vpop.f32.mrb[0].mxu0
      %v357 = vadd.f32 %v248, %v356
      %v358 = vpop.f32.mrb[0].mxu0
      %359 = vdwg.mxu0
      %vm360 = vcmask 785408
      %361 = vst.msk [vmem:[%s228] sm:$0xff] %vm360, %v330
      %362 = vst.msk [vmem:[%s228 + $0x8] sm:$0xff] %vm360, %v333
      %363 = vst.msk [vmem:[%s228 + $0x10] sm:$0xff] %vm360, %v338
      %364 = vst.msk [vmem:[%s228 + $0x18] sm:$0xff] %vm360, %v341
      %365 = vst.msk [vmem:[%s228 + $0x20] sm:$0xff] %vm360, %v346
      %366 = vst.msk [vmem:[%s228 + $0x28] sm:$0xff] %vm360, %v349
      %367 = vst.msk [vmem:[%s228 + $0x30] sm:$0xff] %vm360, %v354
      %368 = vst.msk [vmem:[%s228 + $0x38] sm:$0xff] %vm360, %v357
      %s369 = smul.u32 8, %s19
      %p370 = scmp.lt.s32.totalorder %s18, 1
      %s371 = scalar_select %p370, %s18, 1
      %p372 = scmp.lt.s32.totalorder %s369, 7
      %s373 = scalar_select %p372, %s369, 7
      %s374 = smul.addr %s371, 8
      %s375 = sadd.s32 %s373, %s374
      %s376 = smul.addr %s375, 8
      %s377 = scalar_lea.vmem %s3, %s376
      // Predicated region
      $region33: #{_encoder_forward.4} parent=31 // pred_check
        %p378 = pneg %p124
      $region34: #{_encoder_forward.4} parent=31 // pred_check_branch
        %380 = sbr.rel (%p378) target = $region36
      $region35: #{_encoder_forward.4} parent=31 // pred_region
        %s381 = smul.u32 8, %s19
      $region36: #{_encoder_forward.4} parent=31 // pred_fallthru
        _
    $region32: #{_encoder_forward.4} parent=5 // pred_fallthru
      _
    %p382 = scmp.le.s32.totalorder 2, %s9
    // Predicated region
    $region37: #{_encoder_forward.4} parent=5 // pred_check
      %p383 = pneg %p382
    $region38: #{_encoder_forward.4} parent=5 // pred_check_branch
      %385 = sbr.rel (%p383) target = $region40
    $region39: #{_encoder_forward.4} parent=5 // pred_region
      %s386 = ssub.s32 %s9, 2
      // Predicated region
      $region41: #{_encoder_forward.4} parent=39 // pred_check
        %p387 = pneg %p130
      $region42: #{_encoder_forward.4} parent=39 // pred_check_branch
        %389 = sbr.rel (%p387) target = $region44
      $region43: #{_encoder_forward.4} parent=39 // pred_region
        %s390 = smul.u32 8, %s21
        %p391 = scmp.lt.s32.totalorder %s20, 1
        %s392 = scalar_select %p391, %s20, 1
        %p393 = scmp.lt.s32.totalorder %s390, 7
        %s394 = scalar_select %p393, %s390, 7
        %s395 = smul.addr %s392, 8
        %s396 = sadd.s32 %s394, %s395
        %s397 = smul.addr %s396, 8
        %s398 = scalar_lea.vmem %s3, %s397
      $region44: #{_encoder_forward.4} parent=39 // pred_fallthru
        _
    $region40: #{_encoder_forward.4} parent=5 // pred_fallthru
      _
  $region6: #{_encoder_forward.4} parent=0 // loop_footer
    %s13 = sadd.s32 1, %s9
  $region7: #{_encoder_forward.4} parent=0 // loop_footer_branch
    %8 = sbr.rel target = $region3
  $region8: #{_encoder_forward.4} parent=0 // loop_exit
    _

// kernel: _encoder_forward.7
$region0: #{_encoder_forward.7}
  #allocation0 [shape = 'u32[]', space=smem, size = 0x4, offset = 0x4, fixed_abs, tag = 'smem constant byte address 0x4 - core index']
  #allocation1 [shape = 'u32[144,128]{1,0:T(1,128)}', space=vmem, size = 0x12000, scoped, tag = 'internal scratch']
  #allocation2 [shape = 'f32[8,32]{1,0:T(8,128)}', space=vmem, size = 0x1000, scoped, tag = 'scratch operand']
  %s0 = inlined_call_operand.vmem [shape: f32[2,8,8,96], index: 0, kind: input, shape index: {}]
  %s1 = inlined_call_operand.vmem [shape: bf16[2,32,96], index: 1, kind: input, shape index: {}]
  %s2 = inlined_call_operand.vmem [shape: f32[2,1,96], index: 2, kind: input, shape index: {}]
  %s3 = inlined_call_operand.hbm [shape: bf16[2,8,8,32], index: 3, kind: output, shape index: {0}]
  %s4 = inlined_call_operand.vmem [shape: f32[2,8,32], index: 4, kind: output, shape index: {1}]
  %5 = xla_tuple %s3, %s4
  %s6 = sld [smem:[#allocation0]]
  $region60: #{_encoder_forward.7} parent=0
    _
  %s8 = ssub.s32 1, %s6
  %s9 = scalar_select 0, %s8, %s6
  $region1: #{_encoder_forward.7} parent=0
    #allocation3 [shape = 'u8[32768]{0}', space=vmem, size = 0x8000, scoped, tag = 'output window, operand 0']
    #allocation4 [shape = 's32[2]{0}', space=sflag, size = 0x8, scoped, tag = 'scoped memory for _encoder_forward.7']
    %10 = vsyncpa [#allocation4], 0
    %s11 = scalar_lea.sflag [#allocation4], 1
    %12 = vsyncpa %s11, 0
    loop: start=0, step=1, limit=4
    $region2: #{_encoder_forward.7} parent=1 // loop_pre_header
      _
    $region3: #{_encoder_forward.7} parent=1 // loop_header
      %s14 = sphi 0, %s18
      %p15 = scmp.ge.s32.totalorder %s14, 4
      %s21 = sphi 0, %s33
      %s22 = sphi 0, %s29
      %s23 = sphi 0, %s21
      %s24 = sphi 0, %s22
      %s25 = sphi 0, %s23
      %s26 = sphi 0, %s24
      %s38 = sphi 0, %s40
      %s41 = sphi 0, %s38
      %s42 = sphi 0, %s41
      %s58 = sphi 0, %s42
      %s64 = sphi 0, %s66
      %s67 = sphi 0, %s64
      %s68 = sphi 0, %s67
      %s84 = sphi 0, %s68
      %s90 = sphi 0, %s92
      %s93 = sphi 0, %s90
      %s94 = sphi 0, %s93
      %s110 = sphi 0, %s94
      %s118 = sphi 0, %s120
      %s121 = sphi 0, %s118
      %s122 = sphi 0, %s121
      %s138 = sphi 0, %s122
      %s146 = sphi 0, %s148
      %s149 = sphi 0, %s146
      %s150 = sphi 0, %s149
      %s166 = sphi 0, %s150
    $region4: #{_encoder_forward.7} parent=1 // loop_header_branch
      %17 = sbr.rel (%p15) target = $region8
    $region5: #{_encoder_forward.7} parent=1 // loop_body
      %s19 = ssub.s32 %s14, 1
      %s20 = ssub.s32 %s14, 2
      %s27 = sadd.s32 1, %s22
      %p28 = scmp.ge.s32.totalorder %s27, 1
      %s29 = scalar_select %p28, 0, %s27
      %s30 = sadd.s32 1, %s21
      %s31 = scalar_select %p28, %s30, %s21
      %p32 = scmp.ge.s32.totalorder %s31, 2
      %s33 = scalar_select %p32, 0, %s31
      %s34 = ssub.s32 %s21, %s33
      %s35 = ssub.s32 %s22, %s29
      %s36 = sor.u32 %s34, %s35
      %p37 = scmp.eq.s32.totalorder %s36, 0
      %s39 = sadd.s32 %s38, 1
      %s40 = scalar_select %p37, %s38, %s39
      %p43 = pneg %p37
      %p44 = scmp.eq.s32.totalorder %s14, 1
      %p45 = por %p43, %p44
      %p46 = scmp.ne.s32.totalorder %s38, %s41
      %p47 = scmp.eq.s32.totalorder %s14, 0
      %p48 = por %p46, %p47
      %p49 = scmp.ne.s32.totalorder %s38, %s41
      %p50 = scmp.eq.s32.totalorder %s19, 1
      %p51 = por %p49, %p50
      %p52 = scmp.ne.s32.totalorder %s41, %s42
      %p53 = scmp.eq.s32.totalorder %s19, 0
      %p54 = por %p52, %p53
      %p55 = scmp.ne.s32.totalorder %s41, %s42
      %p56 = scmp.eq.s32.totalorder %s20, 1
      %p57 = por %p55, %p56
      %p59 = scmp.ne.s32.totalorder %s42, %s58
      %p60 = scmp.eq.s32.totalorder %s20, 0
      %p61 = por %p59, %p60
      %s62 = ssub.s32 %s21, %s33
      %p63 = scmp.eq.s32.totalorder %s62, 0
      %s65 = sadd.s32 %s64, 1
      %s66 = scalar_select %p63, %s64, %s65
      %p69 = pneg %p63
      %p70 = scmp.eq.s32.totalorder %s14, 1
      %p71 = por %p69, %p70
      %p72 = scmp.ne.s32.totalorder %s64, %s67
      %p73 = scmp.eq.s32.totalorder %s14, 0
      %p74 = por %p72, %p73
      %p75 = scmp.ne.s32.totalorder %s64, %s67
      %p76 = scmp.eq.s32.totalorder %s19, 1
      %p77 = por %p75, %p76
      %p78 = scmp.ne.s32.totalorder %s67, %s68
      %p79 = scmp.eq.s32.totalorder %s19, 0
      %p80 = por %p78, %p79
      %p81 = scmp.ne.s32.totalorder %s67, %s68
      %p82 = scmp.eq.s32.totalorder %s20, 1
      %p83 = por %p81, %p82
      %p85 = scmp.ne.s32.totalorder %s68, %s84
      %p86 = scmp.eq.s32.totalorder %s20, 0
      %p87 = por %p85, %p86
      %s88 = ssub.s32 %s21, %s33
      %p89 = scmp.eq.s32.totalorder %s88, 0
      %s91 = sadd.s32 %s90, 1
      %s92 = scalar_select %p89, %s90, %s91
      %p95 = pneg %p89
      %p96 = scmp.eq.s32.totalorder %s14, 1
      %p97 = por %p95, %p96
      %p98 = scmp.ne.s32.totalorder %s90, %s93
      %p99 = scmp.eq.s32.totalorder %s14, 0
      %p100 = por %p98, %p99
      %p101 = scmp.ne.s32.totalorder %s90, %s93
      %p102 = scmp.eq.s32.totalorder %s19, 1
      %p103 = por %p101, %p102
      %p104 = scmp.ne.s32.totalorder %s93, %s94
      %p105 = scmp.eq.s32.totalorder %s19, 0
      %p106 = por %p104, %p105
      %p107 = scmp.ne.s32.totalorder %s93, %s94
      %p108 = scmp.eq.s32.totalorder %s20, 1
      %p109 = por %p107, %p108
      %p111 = scmp.ne.s32.totalorder %s94, %s110
      %p112 = scmp.eq.s32.totalorder %s20, 0
      %p113 = por %p111, %p112
      %s114 = ssub.s32 %s21, %s33
      %s115 = ssub.s32 %s22, %s29
      %s116 = sor.u32 %s114, %s115
      %p117 = scmp.eq.s32.totalorder %s116, 0
      %s119 = sadd.s32 %s118, 1
      %s120 = scalar_select %p117, %s118, %s119
      %p123 = pneg %p117
      %p124 = scmp.eq.s32.totalorder %s14, 1
      %p125 = por %p123, %p124
      %p126 = scmp.ne.s32.totalorder %s118, %s121
      %p127 = scmp.eq.s32.totalorder %s14, 0
      %p128 = por %p126, %p127
      %p129 = scmp.ne.s32.totalorder %s118, %s121
      %p130 = scmp.eq.s32.totalorder %s19, 1
      %p131 = por %p129, %p130
      %p132 = scmp.ne.s32.totalorder %s121, %s122
      %p133 = scmp.eq.s32.totalorder %s19, 0
      %p134 = por %p132, %p133
      %p135 = scmp.ne.s32.totalorder %s121, %s122
      %p136 = scmp.eq.s32.totalorder %s20, 1
      %p137 = por %p135, %p136
      %p139 = scmp.ne.s32.totalorder %s122, %s138
      %p140 = scmp.eq.s32.totalorder %s20, 0
      %p141 = por %p139, %p140
      %s142 = ssub.s32 %s21, %s33
      %s143 = ssub.s32 %s22, %s29
      %s144 = sor.u32 %s142, %s143
      %p145 = scmp.eq.s32.totalorder %s144, 0
      %s147 = sadd.s32 %s146, 1
      %s148 = scalar_select %p145, %s146, %s147
      %p151 = pneg %p145
      %p152 = scmp.eq.s32.totalorder %s14, 1
      %p153 = por %p151, %p152
      %p154 = scmp.ne.s32.totalorder %s146, %s149
      %p155 = scmp.eq.s32.totalorder %s14, 0
      %p156 = por %p154, %p155
      %p157 = scmp.ne.s32.totalorder %s146, %s149
      %p158 = scmp.eq.s32.totalorder %s19, 1
      %p159 = por %p157, %p158
      %p160 = scmp.ne.s32.totalorder %s149, %s150
      %p161 = scmp.eq.s32.totalorder %s19, 0
      %p162 = por %p160, %p161
      %p163 = scmp.ne.s32.totalorder %s149, %s150
      %p164 = scmp.eq.s32.totalorder %s20, 1
      %p165 = por %p163, %p164
      %p167 = scmp.ne.s32.totalorder %s150, %s166
      %p168 = scmp.eq.s32.totalorder %s20, 0
      %p169 = por %p167, %p168
      %p170 = scmp.le.s32.totalorder 1, %s14
      %p171 = scmp.lt.s32.totalorder %s14, 3
      %p172 = pnand %p170, %p171
      %p173 = pneg %p172
      // Predicated region
      $region9: #{_encoder_forward.7} parent=5 // pred_check
        _
      $region10: #{_encoder_forward.7} parent=5 // pred_check_branch
        %175 = sbr.rel (%p172) target = $region12
      $region11: #{_encoder_forward.7} parent=5 // pred_region
        %s176 = ssub.s32 %s14, 1
      $region12: #{_encoder_forward.7} parent=5 // pred_fallthru
        _
      %p177 = scmp.lt.s32.totalorder %s14, 2
      // Predicated region
      $region13: #{_encoder_forward.7} parent=5 // pred_check
        %p178 = pneg %p177
      $region14: #{_encoder_forward.7} parent=5 // pred_check_branch
        %180 = sbr.rel (%p178) target = $region16
      $region15: #{_encoder_forward.7} parent=5 // pred_region
        // Predicated region
        $region17: #{_encoder_forward.7} parent=15 // pred_check
          %p181 = pneg %p48
        $region18: #{_encoder_forward.7} parent=15 // pred_check_branch
          %183 = sbr.rel (%p181) target = $region20
        $region19: #{_encoder_forward.7} parent=15 // pred_region
          %p184 = scmp.lt.s32.totalorder %s21, 1
          %s185 = scalar_select %p184, %s21, 1
          %p186 = scmp.lt.s32.totalorder %s22, 0
          %s187 = scalar_select %p186, %s22, 0
          %s188 = smul.addr %s185, 8
          %s189 = sadd.s32 %s187, %s188
          %s190 = smul.addr %s189, 8
          %s191 = scalar_lea.vmem %s0, %s190
        $region20: #{_encoder_forward.7} parent=15 // pred_fallthru
          _
        // Predicated region
        $region21: #{_encoder_forward.7} parent=15 // pred_check
          %p192 = pneg %p74
        $region22: #{_encoder_forward.7} parent=15 // pred_check_branch
          %194 = sbr.rel (%p192) target = $region24
        $region23: #{_encoder_forward.7} parent=15 // pred_region
          %p195 = scmp.lt.s32.totalorder %s21, 1
          %s196 = scalar_select %p195, %s21, 1
          %s197 = smul.addr %s196, 4
          %s198 = smul.addr %s197, 4
          %s199 = scalar_lea.vmem %s1, %s198
        $region24: #{_encoder_forward.7} parent=15 // pred_fallthru
          _
        // Predicated region
        $region25: #{_encoder_forward.7} parent=15 // pred_check
          %p200 = pneg %p100
        $region26: #{_encoder_forward.7} parent=15 // pred_check_branch
          %202 = sbr.rel (%p200) target = $region28
        $region27: #{_encoder_forward.7} parent=15 // pred_region
          %p203 = scmp.lt.s32.totalorder %s21, 1
          %s204 = scalar_select %p203, %s21, 1
          %s205 = scalar_lea.vmem %s2, %s204
        $region28: #{_encoder_forward.7} parent=15 // pred_fallthru
          _
      $region16: #{_encoder_forward.7} parent=5 // pred_fallthru
        _
      %p206 = scmp.le.s32.totalorder 1, %s14
      %p207 = scmp.lt.s32.totalorder %s14, 3
      %p208 = pnand %p206, %p207
      %p209 = pneg %p208
      // Predicated region
      $region29: #{_encoder_forward.7} parent=5 // pred_check
        _
      $region30: #{_encoder_forward.7} parent=5 // pred_check_branch
        %211 = sbr.rel (%p208) target = $region32
      $region31: #{_encoder_forward.7} parent=5 // pred_region
        %s212 = ssub.s32 %s14, 1
        %p213 = scmp.lt.s32.totalorder %s23, 1
        %s214 = scalar_select %p213, %s23, 1
        %p215 = scmp.lt.s32.totalorder %s24, 0
        %s216 = scalar_select %p215, %s24, 0
        %s217 = smul.addr %s214, 8
        %s218 = sadd.s32 %s216, %s217
        %s219 = smul.addr %s218, 8
        %s220 = scalar_lea.vmem %s0, %s219
        %p221 = pneg %p54
        %p222 = pneg %p51
        %p223 = scmp.lt.s32.totalorder %s23, 1
        %s224 = scalar_select %p223, %s23, 1
        %s225 = smul.addr %s224, 4
        %s226 = smul.addr %s225, 4
        %s227 = scalar_lea.vmem %s1, %s226
        %p228 = pneg %p80
        %p229 = pneg %p77
        %p230 = scmp.lt.s32.totalorder %s23, 1
        %s231 = scalar_select %p230, %s23, 1
        %s232 = scalar_lea.vmem %s2, %s231
        %p233 = pneg %p106
        %p234 = pneg %p103
        %p235 = pneg %p134
        %p236 = pneg %p131
        %s237 = sand.u32 %s121, 1
        %s238 = scalar_lea.sflag [#allocation4], %s237
        %s239 = sand.u32 %s121, 1
        %s240 = smul.addr %s239, 32
        %s241 = scalar_lea.vmem [#allocation3], %s240
        %p242 = pneg %p162
        %p243 = pneg %p159
        %p244 = scmp.lt.s32.totalorder %s23, 1
        %s245 = scalar_select %p244, %s23, 1
        %p246 = scmp.lt.s32.totalorder %s24, 0
        %s247 = scalar_select %p246, %s24, 0
        %s248 = sadd.s32 %s247, %s245
        %s249 = smul.addr %s248, 8
        %s250 = scalar_lea.vmem %s4, %s249
        %p251 = scmp.lt.s32.totalorder %s23, 1
        %s252 = scalar_select %p251, %s23, 1
        %p253 = scmp.lt.s32.totalorder %s24, 0
        %s254 = scalar_select %p253, %s24, 0
        %s255 = smul.addr %s252, 8
        %s256 = sadd.s32 %s254, %s255
        %s257 = smul.addr %s256, 8
        %s258 = scalar_lea.vmem %s0, %s257
        %p259 = scmp.lt.s32.totalorder %s23, 1
        %s260 = scalar_select %p259, %s23, 1
        %s261 = smul.addr %s260, 4
        %s262 = smul.addr %s261, 4
        %s263 = scalar_lea.vmem %s1, %s262
        %p264 = scmp.lt.s32.totalorder %s23, 1
        %s265 = scalar_select %p264, %s23, 1
        %s266 = scalar_lea.vmem %s2, %s265
        %p267 = scmp.lt.s32.totalorder %s23, 1
        %s268 = scalar_select %p267, %s23, 1
        %p269 = scmp.lt.s32.totalorder %s24, 0
        %s270 = scalar_select %p269, %s24, 0
        %s271 = sadd.s32 %s270, %s268
        %s272 = smul.addr %s271, 8
        %s273 = scalar_lea.vmem %s4, %s272
        %vm275 = vcmask 261120
        %276 = vst.msk [vmem:[#allocation2] sm:$0xff] %vm275, 0.0
        %v277 = vld [vmem:[%s263] sm:$0xf]
        %v278 = vld [vmem:[%s263 + $0x4] sm:$0xf]
        %v279 = vld [vmem:[%s263 + $0x8] sm:$0xf]
        %v280 = vld [vmem:[%s263 + $0xc] sm:$0xf]
        %v281 = vld [vmem:[%s266] sm:$0x1]
        %v283 = vlaneseq
        %v284 = vshrl.u32 %v283, 7
        %v285 = vsub.s32 0, %v284
        %v286 = vrot.slane %v281, %v285
        loop: start=0, step=1, limit=8
        $region33: #{_encoder_forward.7} parent=31 // loop_pre_header
          _
        $region34: #{_encoder_forward.7} parent=31 // loop_header
          %s289 = sphi 0, %s293
          %p290 = scmp.ge.s32.totalorder %s289, 8
        $region35: #{_encoder_forward.7} parent=31 // loop_header_branch
          %292 = sbr.rel (%p290) target = $region39
        $region36: #{_encoder_forward.7} parent=31 // loop_body
          %s294 = smul.u32 %s23, 7
          %s295 = smul.u32 %s23, 2
          %s296 = ssub.s32 1, %s295
          %s297 = smul.u32 %s296, %s289
          %s298 = sadd.s32 %s294, %s297
          %s299 = smul.u32 %s298, 8
          %s300 = scalar_lea.vmem %s258, %s299
          %v301 = vld [vmem:[%s300] sm:$0xff]
          %v302 = vld [vmem:[#allocation2] sm:$0xff]
          %v303 = vpack.c.bf16 %v302, %v302
          %v308 = vunpack.c.l.b16 %v277
          %v309 = vunpack.c.l.b16 %v278
          %v310 = vunpack.c.l.b16 %v279
          %v311 = vunpack.c.l.b16 %v280
          %v312 = vpack.c.b16 %v309, %v308
          %v313 = vpack.c.b16 %v311, %v310
          %v317 = vsel %vm275, %v303, 0
          %319 = vmatprep.subr.bf16.mxu0 0
          %320 = vmatpush1.bf16.msra.mxu0 %v312
          %321 = vmatprep.subr.bf16.mxu0 0
          %322 = vmatpush1.bf16.msra.mxu0 %v313
          %323 = vmatprep.subr.bf16.mxu0 0
          %324 = vmatpush1.bf16.msra.mxu0 0
          %325 = vmatprep.subr.bf16.mxu0 0
          %326 = vmatpush1.bf16.msra.mxu0 0
          %327 = vmatprep.subr.bf16.mxu0 0
          %328 = vmatpush1.bf16.msra.mxu0 0
          %329 = vmatprep.subr.bf16.mxu0 0
          %330 = vmatpush1.bf16.msra.mxu0 0
          %331 = vmatprep.subr.bf16.mxu0 0
          %332 = vmatpush1.bf16.msra.mxu0 0
          %333 = vmatprep.subr.bf16.mxu0 0
          %334 = vmatpush1.bf16.msra.mxu0 0
          %335 = vmatprep.subr.bf16.mxu0 0
          %336 = vmatpush1.bf16.msra.mxu0 0
          %337 = vmatprep.subr.bf16.mxu0 0
          %338 = vmatpush1.bf16.msra.mxu0 0
          %339 = vmatprep.subr.bf16.mxu0 0
          %340 = vmatpush1.bf16.msra.mxu0 0
          %341 = vmatprep.subr.bf16.mxu0 0
          %342 = vmatpush1.bf16.msra.mxu0 0
          %343 = vmatprep.subr.bf16.mxu0 0
          %344 = vmatpush1.bf16.msra.mxu0 0
          %345 = vmatprep.subr.bf16.mxu0 0
          %346 = vmatpush1.bf16.msra.mxu0 0
          %347 = vmatprep.subr.bf16.mxu0 0
          %348 = vmatpush1.bf16.msra.mxu0 0
          %349 = vmatprep.subr.bf16.mxu0 0
          %350 = vmatpush1.bf16.msra.mxu0 0
          %351 = vmatprep.mubr.bf16.mxu0 0
          %352 = vmatmul.mubr.bf16.gmra.mrb[0].mxu0 %v317
          %v353 = vpop.f32.mrb[0].mxu0
          %v354 = vadd.f32 %v286, %v353
          %v355 = vpop.f32.mrb[0].mxu0
          %v356 = vpop.f32.mrb[0].mxu0
          %v357 = vpop.f32.mrb[0].mxu0
          %358 = vdwg.mxu0
          %v359 = vadd.f32 %v301, %v354
          %v360 = vxor.u32 %v359, 2147483648
          %v361 = vmul.f32 %v360, 1.442695
          %v362 = vpow.pop %v361
          %v363 = vadd.f32 %v362, 1.0
          %v364 = vrcp.pop %v363
          %v365 = vmul.f32 1.0, %v364
          %367 = vrot.lane.b32.xlu0 %v354, 64
          %v368 = vpop.permute.xlu0 %367
          %v370 = vmul.f32 %v365, %v368
          %372 = vrot.lane.b32.xlu0 %v370, 64
          %v373 = vpop.permute.xlu0 %372
          %v375 = vadd.f32 %v301, %v373
          %v376 = vtanh.pop %v375
          %v377 = vsub.f32 1.0, %v365
          %379 = vrot.lane.b32.xlu0 %v376, 96
          %v380 = vpop.permute.xlu0 %379
          %v382 = vmul.f32 %v377, %v380
          %384 = vrot.lane.b32.xlu0 %v302, 32
          %v385 = vpop.permute.xlu0 %384
          %v387 = vmul.f32 %v365, %v385
          %v388 = vadd.f32 %v382, %v387
          %390 = vrot.lane.b32.xlu0 %v388, 96
          %v391 = vpop.permute.xlu0 %390
          %393 = vst.msk [vmem:[#allocation2] sm:$0xff] %vm275, %v391
          %v394 = vpack.c.bf16 %v388, %v388
          %v396 = vunpack.c.l.b16 %v394
          %v397 = vpack.c.b16 %v396, %v396
          %398 = vrot.lane.b32.xlu0 %v397, 96
          %v399 = vpop.permute.xlu0 %398
          %s401 = smul.addr %s298, 4
          %s402 = scalar_lea.vmem %s241, %s401 [#allocation3]
          %vm403 = vcmask 257024
          %404 = vst.msk [vmem:[%s402] sm:$0xf] %vm403, %v399
        $region37: #{_encoder_forward.7} parent=31 // loop_footer
          %s293 = sadd.s32 1, %s289
        $region38: #{_encoder_forward.7} parent=31 // loop_footer_branch
          %288 = sbr.rel target = $region34
        $region39: #{_encoder_forward.7} parent=31 // loop_exit
          _
        %v405 = vld [vmem:[#allocation2] sm:$0xff]
        %406 = vst.msk [vmem:[%s273] sm:$0xff] %vm275, %v405
        %s407 = sand.u32 %s121, 1
        %s408 = scalar_lea.sflag [#allocation4], %s407
        %s409 = sand.u32 %s121, 1
        %s410 = smul.addr %s409, 32
        %s411 = scalar_lea.vmem [#allocation3], %s410
        %p412 = scmp.lt.s32.totalorder %s23, 1
        %s413 = scalar_select %p412, %s23, 1
        %p414 = scmp.lt.s32.totalorder %s24, 0
        %s415 = scalar_select %p414, %s24, 0
        %s416 = sadd.s32 %s415, %s413
        %s417 = smul.addr %s416, 8
        %s418 = scalar_lea.vmem %s4, %s417
        // Predicated region
        $region40: #{_encoder_forward.7} parent=31 // pred_check
          %p419 = pneg %p131
        $region41: #{_encoder_forward.7} parent=31 // pred_check_branch
          %421 = sbr.rel (%p419) target = $region43
        $region42: #{_encoder_forward.7} parent=31 // pred_region
          %s423 = ssub.s32 512, 512
          %424 = vsyncadd %s408, %s423
          %s425 = smul.addr %s23, 8
          %s426 = sadd.s32 %s24, %s425
          %s427 = smul.addr %s426, 64
          %s428 = scalar_lea.hbm %s3, %s427
          %s429 = sshll.u32 %s411, 4
          %s430 = int_to_ptr.vmem [resolvable:$true] %s429
          %435 = dma.vmem_to_hbm [thread:$0]  %s430, 512, %s428, %s408, 64, 64, 4
        $region43: #{_encoder_forward.7} parent=31 // pred_fallthru
          _
        // Predicated region
        $region44: #{_encoder_forward.7} parent=31 // pred_check
          %p436 = pneg %p159
        $region45: #{_encoder_forward.7} parent=31 // pred_check_branch
          %438 = sbr.rel (%p436) target = $region47
        $region46: #{_encoder_forward.7} parent=31 // pred_region
          _
        $region47: #{_encoder_forward.7} parent=31 // pred_fallthru
          _
      $region32: #{_encoder_forward.7} parent=5 // pred_fallthru
        _
      %p439 = scmp.le.s32.totalorder 2, %s14
      // Predicated region
      $region48: #{_encoder_forward.7} parent=5 // pred_check
        %p440 = pneg %p439
      $region49: #{_encoder_forward.7} parent=5 // pred_check_branch
        %442 = sbr.rel (%p440) target = $region51
      $region50: #{_encoder_forward.7} parent=5 // pred_region
        %s443 = ssub.s32 %s14, 2
        // Predicated region
        $region52: #{_encoder_forward.7} parent=50 // pred_check
          %p444 = pneg %p137
        $region53: #{_encoder_forward.7} parent=50 // pred_check_branch
          %446 = sbr.rel (%p444) target = $region55
        $region54: #{_encoder_forward.7} parent=50 // pred_region
          %s447 = sand.u32 %s122, 1
          %s448 = scalar_lea.sflag [#allocation4], %s447
          %s449 = sand.u32 %s122, 1
          %s450 = smul.addr %s449, 32
          %s451 = scalar_lea.vmem [#allocation3], %s450
          %452 = dma.done %s448, 512
        $region55: #{_encoder_forward.7} parent=50 // pred_fallthru
          _
        // Predicated region
        $region56: #{_encoder_forward.7} parent=50 // pred_check
          %p453 = pneg %p165
        $region57: #{_encoder_forward.7} parent=50 // pred_check_branch
          %455 = sbr.rel (%p453) target = $region59
        $region58: #{_encoder_forward.7} parent=50 // pred_region
          %p456 = scmp.lt.s32.totalorder %s25, 1
          %s457 = scalar_select %p456, %s25, 1
          %p458 = scmp.lt.s32.totalorder %s26, 0
          %s459 = scalar_select %p458, %s26, 0
          %s460 = sadd.s32 %s459, %s457
          %s461 = smul.addr %s460, 8
          %s462 = scalar_lea.vmem %s4, %s461
        $region59: #{_encoder_forward.7} parent=50 // pred_fallthru
          _
      $region51: #{_encoder_forward.7} parent=5 // pred_fallthru
        _
    $region6: #{_encoder_forward.7} parent=1 // loop_footer
      %s18 = sadd.s32 1, %s14
    $region7: #{_encoder_forward.7} parent=1 // loop_footer_branch
      %13 = sbr.rel target = $region3
    $region8: #{_encoder_forward.7} parent=1 // loop_exit
      _
    %463 = vsyncpa [#allocation4], 1
    %s464 = scalar_lea.sflag [#allocation4], 1
    %465 = vsyncpa %s464, 1

// kernel: _encoder_forward.5
$region0: #{_encoder_forward.5}
  #allocation0 [shape = 'u32[]', space=smem, size = 0x4, offset = 0x4, fixed_abs, tag = 'smem constant byte address 0x4 - core index']
  #allocation1 [shape = 'u32[144,128]{1,0:T(1,128)}', space=vmem, size = 0x12000, scoped, tag = 'internal scratch']
  #allocation2 [shape = 'f32[8,32]{1,0:T(8,128)}', space=vmem, size = 0x1000, scoped, tag = 'scratch operand']
  %s0 = inlined_call_operand.vmem [shape: f32[2,8,8,96], index: 0, kind: input, shape index: {}]
  %s1 = inlined_call_operand.vmem [shape: bf16[2,32,96], index: 1, kind: input, shape index: {}]
  %s2 = inlined_call_operand.vmem [shape: f32[2,1,96], index: 2, kind: input, shape index: {}]
  %s3 = inlined_call_operand.vmem [shape: bf16[2,8,8,32], index: 3, kind: output, shape index: {0}]
  %s4 = inlined_call_operand.hbm [shape: f32[2,8,32], index: 4, kind: output, shape index: {1}]
  %5 = xla_tuple %s3, %s4
  %s6 = sld [smem:[#allocation0]]
  $region60: #{_encoder_forward.5} parent=0
    _
  %s8 = ssub.s32 1, %s6
  %s9 = scalar_select 0, %s8, %s6
  $region1: #{_encoder_forward.5} parent=0
    #allocation3 [shape = 'u8[8192]{0}', space=vmem, size = 0x2000, scoped, tag = 'output window, operand 1']
    #allocation4 [shape = 's32[2]{0}', space=sflag, size = 0x8, scoped, tag = 'scoped memory for _encoder_forward.5']
    %10 = vsyncpa [#allocation4], 0
    %s11 = scalar_lea.sflag [#allocation4], 1
    %12 = vsyncpa %s11, 0
    loop: start=0, step=1, limit=4
    $region2: #{_encoder_forward.5} parent=1 // loop_pre_header
      _
    $region3: #{_encoder_forward.5} parent=1 // loop_header
      %s14 = sphi 0, %s18
      %p15 = scmp.ge.s32.totalorder %s14, 4
      %s21 = sphi 0, %s33
      %s22 = sphi 0, %s29
      %s23 = sphi 0, %s21
      %s24 = sphi 0, %s22
      %s25 = sphi 0, %s23
      %s26 = sphi 0, %s24
      %s38 = sphi 0, %s40
      %s41 = sphi 0, %s38
      %s42 = sphi 0, %s41
      %s58 = sphi 0, %s42
      %s64 = sphi 0, %s66
      %s67 = sphi 0, %s64
      %s68 = sphi 0, %s67
      %s84 = sphi 0, %s68
      %s90 = sphi 0, %s92
      %s93 = sphi 0, %s90
      %s94 = sphi 0, %s93
      %s110 = sphi 0, %s94
      %s118 = sphi 0, %s120
      %s121 = sphi 0, %s118
      %s122 = sphi 0, %s121
      %s138 = sphi 0, %s122
      %s146 = sphi 0, %s148
      %s149 = sphi 0, %s146
      %s150 = sphi 0, %s149
      %s166 = sphi 0, %s150
    $region4: #{_encoder_forward.5} parent=1 // loop_header_branch
      %17 = sbr.rel (%p15) target = $region8
    $region5: #{_encoder_forward.5} parent=1 // loop_body
      %s19 = ssub.s32 %s14, 1
      %s20 = ssub.s32 %s14, 2
      %s27 = sadd.s32 1, %s22
      %p28 = scmp.ge.s32.totalorder %s27, 1
      %s29 = scalar_select %p28, 0, %s27
      %s30 = sadd.s32 1, %s21
      %s31 = scalar_select %p28, %s30, %s21
      %p32 = scmp.ge.s32.totalorder %s31, 2
      %s33 = scalar_select %p32, 0, %s31
      %s34 = ssub.s32 %s21, %s33
      %s35 = ssub.s32 %s22, %s29
      %s36 = sor.u32 %s34, %s35
      %p37 = scmp.eq.s32.totalorder %s36, 0
      %s39 = sadd.s32 %s38, 1
      %s40 = scalar_select %p37, %s38, %s39
      %p43 = pneg %p37
      %p44 = scmp.eq.s32.totalorder %s14, 1
      %p45 = por %p43, %p44
      %p46 = scmp.ne.s32.totalorder %s38, %s41
      %p47 = scmp.eq.s32.totalorder %s14, 0
      %p48 = por %p46, %p47
      %p49 = scmp.ne.s32.totalorder %s38, %s41
      %p50 = scmp.eq.s32.totalorder %s19, 1
      %p51 = por %p49, %p50
      %p52 = scmp.ne.s32.totalorder %s41, %s42
      %p53 = scmp.eq.s32.totalorder %s19, 0
      %p54 = por %p52, %p53
      %p55 = scmp.ne.s32.totalorder %s41, %s42
      %p56 = scmp.eq.s32.totalorder %s20, 1
      %p57 = por %p55, %p56
      %p59 = scmp.ne.s32.totalorder %s42, %s58
      %p60 = scmp.eq.s32.totalorder %s20, 0
      %p61 = por %p59, %p60
      %s62 = ssub.s32 %s21, %s33
      %p63 = scmp.eq.s32.totalorder %s62, 0
      %s65 = sadd.s32 %s64, 1
      %s66 = scalar_select %p63, %s64, %s65
      %p69 = pneg %p63
      %p70 = scmp.eq.s32.totalorder %s14, 1
      %p71 = por %p69, %p70
      %p72 = scmp.ne.s32.totalorder %s64, %s67
      %p73 = scmp.eq.s32.totalorder %s14, 0
      %p74 = por %p72, %p73
      %p75 = scmp.ne.s32.totalorder %s64, %s67
      %p76 = scmp.eq.s32.totalorder %s19, 1
      %p77 = por %p75, %p76
      %p78 = scmp.ne.s32.totalorder %s67, %s68
      %p79 = scmp.eq.s32.totalorder %s19, 0
      %p80 = por %p78, %p79
      %p81 = scmp.ne.s32.totalorder %s67, %s68
      %p82 = scmp.eq.s32.totalorder %s20, 1
      %p83 = por %p81, %p82
      %p85 = scmp.ne.s32.totalorder %s68, %s84
      %p86 = scmp.eq.s32.totalorder %s20, 0
      %p87 = por %p85, %p86
      %s88 = ssub.s32 %s21, %s33
      %p89 = scmp.eq.s32.totalorder %s88, 0
      %s91 = sadd.s32 %s90, 1
      %s92 = scalar_select %p89, %s90, %s91
      %p95 = pneg %p89
      %p96 = scmp.eq.s32.totalorder %s14, 1
      %p97 = por %p95, %p96
      %p98 = scmp.ne.s32.totalorder %s90, %s93
      %p99 = scmp.eq.s32.totalorder %s14, 0
      %p100 = por %p98, %p99
      %p101 = scmp.ne.s32.totalorder %s90, %s93
      %p102 = scmp.eq.s32.totalorder %s19, 1
      %p103 = por %p101, %p102
      %p104 = scmp.ne.s32.totalorder %s93, %s94
      %p105 = scmp.eq.s32.totalorder %s19, 0
      %p106 = por %p104, %p105
      %p107 = scmp.ne.s32.totalorder %s93, %s94
      %p108 = scmp.eq.s32.totalorder %s20, 1
      %p109 = por %p107, %p108
      %p111 = scmp.ne.s32.totalorder %s94, %s110
      %p112 = scmp.eq.s32.totalorder %s20, 0
      %p113 = por %p111, %p112
      %s114 = ssub.s32 %s21, %s33
      %s115 = ssub.s32 %s22, %s29
      %s116 = sor.u32 %s114, %s115
      %p117 = scmp.eq.s32.totalorder %s116, 0
      %s119 = sadd.s32 %s118, 1
      %s120 = scalar_select %p117, %s118, %s119
      %p123 = pneg %p117
      %p124 = scmp.eq.s32.totalorder %s14, 1
      %p125 = por %p123, %p124
      %p126 = scmp.ne.s32.totalorder %s118, %s121
      %p127 = scmp.eq.s32.totalorder %s14, 0
      %p128 = por %p126, %p127
      %p129 = scmp.ne.s32.totalorder %s118, %s121
      %p130 = scmp.eq.s32.totalorder %s19, 1
      %p131 = por %p129, %p130
      %p132 = scmp.ne.s32.totalorder %s121, %s122
      %p133 = scmp.eq.s32.totalorder %s19, 0
      %p134 = por %p132, %p133
      %p135 = scmp.ne.s32.totalorder %s121, %s122
      %p136 = scmp.eq.s32.totalorder %s20, 1
      %p137 = por %p135, %p136
      %p139 = scmp.ne.s32.totalorder %s122, %s138
      %p140 = scmp.eq.s32.totalorder %s20, 0
      %p141 = por %p139, %p140
      %s142 = ssub.s32 %s21, %s33
      %s143 = ssub.s32 %s22, %s29
      %s144 = sor.u32 %s142, %s143
      %p145 = scmp.eq.s32.totalorder %s144, 0
      %s147 = sadd.s32 %s146, 1
      %s148 = scalar_select %p145, %s146, %s147
      %p151 = pneg %p145
      %p152 = scmp.eq.s32.totalorder %s14, 1
      %p153 = por %p151, %p152
      %p154 = scmp.ne.s32.totalorder %s146, %s149
      %p155 = scmp.eq.s32.totalorder %s14, 0
      %p156 = por %p154, %p155
      %p157 = scmp.ne.s32.totalorder %s146, %s149
      %p158 = scmp.eq.s32.totalorder %s19, 1
      %p159 = por %p157, %p158
      %p160 = scmp.ne.s32.totalorder %s149, %s150
      %p161 = scmp.eq.s32.totalorder %s19, 0
      %p162 = por %p160, %p161
      %p163 = scmp.ne.s32.totalorder %s149, %s150
      %p164 = scmp.eq.s32.totalorder %s20, 1
      %p165 = por %p163, %p164
      %p167 = scmp.ne.s32.totalorder %s150, %s166
      %p168 = scmp.eq.s32.totalorder %s20, 0
      %p169 = por %p167, %p168
      %p170 = scmp.le.s32.totalorder 1, %s14
      %p171 = scmp.lt.s32.totalorder %s14, 3
      %p172 = pnand %p170, %p171
      %p173 = pneg %p172
      // Predicated region
      $region9: #{_encoder_forward.5} parent=5 // pred_check
        _
      $region10: #{_encoder_forward.5} parent=5 // pred_check_branch
        %175 = sbr.rel (%p172) target = $region12
      $region11: #{_encoder_forward.5} parent=5 // pred_region
        %s176 = ssub.s32 %s14, 1
      $region12: #{_encoder_forward.5} parent=5 // pred_fallthru
        _
      %p177 = scmp.lt.s32.totalorder %s14, 2
      // Predicated region
      $region13: #{_encoder_forward.5} parent=5 // pred_check
        %p178 = pneg %p177
      $region14: #{_encoder_forward.5} parent=5 // pred_check_branch
        %180 = sbr.rel (%p178) target = $region16
      $region15: #{_encoder_forward.5} parent=5 // pred_region
        // Predicated region
        $region17: #{_encoder_forward.5} parent=15 // pred_check
          %p181 = pneg %p48
        $region18: #{_encoder_forward.5} parent=15 // pred_check_branch
          %183 = sbr.rel (%p181) target = $region20
        $region19: #{_encoder_forward.5} parent=15 // pred_region
          %p184 = scmp.lt.s32.totalorder %s21, 1
          %s185 = scalar_select %p184, %s21, 1
          %p186 = scmp.lt.s32.totalorder %s22, 0
          %s187 = scalar_select %p186, %s22, 0
          %s188 = smul.addr %s185, 8
          %s189 = sadd.s32 %s187, %s188
          %s190 = smul.addr %s189, 8
          %s191 = scalar_lea.vmem %s0, %s190
        $region20: #{_encoder_forward.5} parent=15 // pred_fallthru
          _
        // Predicated region
        $region21: #{_encoder_forward.5} parent=15 // pred_check
          %p192 = pneg %p74
        $region22: #{_encoder_forward.5} parent=15 // pred_check_branch
          %194 = sbr.rel (%p192) target = $region24
        $region23: #{_encoder_forward.5} parent=15 // pred_region
          %p195 = scmp.lt.s32.totalorder %s21, 1
          %s196 = scalar_select %p195, %s21, 1
          %s197 = smul.addr %s196, 4
          %s198 = smul.addr %s197, 4
          %s199 = scalar_lea.vmem %s1, %s198
        $region24: #{_encoder_forward.5} parent=15 // pred_fallthru
          _
        // Predicated region
        $region25: #{_encoder_forward.5} parent=15 // pred_check
          %p200 = pneg %p100
        $region26: #{_encoder_forward.5} parent=15 // pred_check_branch
          %202 = sbr.rel (%p200) target = $region28
        $region27: #{_encoder_forward.5} parent=15 // pred_region
          %p203 = scmp.lt.s32.totalorder %s21, 1
          %s204 = scalar_select %p203, %s21, 1
          %s205 = scalar_lea.vmem %s2, %s204
        $region28: #{_encoder_forward.5} parent=15 // pred_fallthru
          _
      $region16: #{_encoder_forward.5} parent=5 // pred_fallthru
        _
      %p206 = scmp.le.s32.totalorder 1, %s14
      %p207 = scmp.lt.s32.totalorder %s14, 3
      %p208 = pnand %p206, %p207
      %p209 = pneg %p208
      // Predicated region
      $region29: #{_encoder_forward.5} parent=5 // pred_check
        _
      $region30: #{_encoder_forward.5} parent=5 // pred_check_branch
        %211 = sbr.rel (%p208) target = $region32
      $region31: #{_encoder_forward.5} parent=5 // pred_region
        %s212 = ssub.s32 %s14, 1
        %p213 = scmp.lt.s32.totalorder %s23, 1
        %s214 = scalar_select %p213, %s23, 1
        %p215 = scmp.lt.s32.totalorder %s24, 0
        %s216 = scalar_select %p215, %s24, 0
        %s217 = smul.addr %s214, 8
        %s218 = sadd.s32 %s216, %s217
        %s219 = smul.addr %s218, 8
        %s220 = scalar_lea.vmem %s0, %s219
        %p221 = pneg %p54
        %p222 = pneg %p51
        %p223 = scmp.lt.s32.totalorder %s23, 1
        %s224 = scalar_select %p223, %s23, 1
        %s225 = smul.addr %s224, 4
        %s226 = smul.addr %s225, 4
        %s227 = scalar_lea.vmem %s1, %s226
        %p228 = pneg %p80
        %p229 = pneg %p77
        %p230 = scmp.lt.s32.totalorder %s23, 1
        %s231 = scalar_select %p230, %s23, 1
        %s232 = scalar_lea.vmem %s2, %s231
        %p233 = pneg %p106
        %p234 = pneg %p103
        %p235 = pneg %p134
        %p236 = pneg %p131
        %p237 = scmp.lt.s32.totalorder %s23, 1
        %s238 = scalar_select %p237, %s23, 1
        %p239 = scmp.lt.s32.totalorder %s24, 0
        %s240 = scalar_select %p239, %s24, 0
        %s241 = smul.addr %s238, 8
        %s242 = sadd.s32 %s240, %s241
        %s243 = smul.addr %s242, 4
        %s244 = scalar_lea.vmem %s3, %s243
        %p245 = pneg %p162
        %p246 = pneg %p159
        %s247 = sand.u32 %s149, 1
        %s248 = scalar_lea.sflag [#allocation4], %s247
        %s249 = sand.u32 %s149, 1
        %s250 = smul.addr %s249, 8
        %s251 = scalar_lea.vmem [#allocation3], %s250
        %p252 = scmp.lt.s32.totalorder %s23, 1
        %s253 = scalar_select %p252, %s23, 1
        %p254 = scmp.lt.s32.totalorder %s24, 0
        %s255 = scalar_select %p254, %s24, 0
        %s256 = smul.addr %s253, 8
        %s257 = sadd.s32 %s255, %s256
        %s258 = smul.addr %s257, 8
        %s259 = scalar_lea.vmem %s0, %s258
        %p260 = scmp.lt.s32.totalorder %s23, 1
        %s261 = scalar_select %p260, %s23, 1
        %s262 = smul.addr %s261, 4
        %s263 = smul.addr %s262, 4
        %s264 = scalar_lea.vmem %s1, %s263
        %p265 = scmp.lt.s32.totalorder %s23, 1
        %s266 = scalar_select %p265, %s23, 1
        %s267 = scalar_lea.vmem %s2, %s266
        %p268 = scmp.lt.s32.totalorder %s23, 1
        %s269 = scalar_select %p268, %s23, 1
        %p270 = scmp.lt.s32.totalorder %s24, 0
        %s271 = scalar_select %p270, %s24, 0
        %s272 = smul.addr %s269, 8
        %s273 = sadd.s32 %s271, %s272
        %s274 = smul.addr %s273, 4
        %s275 = scalar_lea.vmem %s3, %s274
        %vm277 = vcmask 261120
        %278 = vst.msk [vmem:[#allocation2] sm:$0xff] %vm277, 0.0
        %v279 = vld [vmem:[%s264] sm:$0xf]
        %v280 = vld [vmem:[%s264 + $0x4] sm:$0xf]
        %v281 = vld [vmem:[%s264 + $0x8] sm:$0xf]
        %v282 = vld [vmem:[%s264 + $0xc] sm:$0xf]
        %v283 = vld [vmem:[%s267] sm:$0x1]
        %v285 = vlaneseq
        %v286 = vshrl.u32 %v285, 7
        %v287 = vsub.s32 0, %v286
        %v288 = vrot.slane %v283, %v287
        loop: start=0, step=1, limit=8
        $region33: #{_encoder_forward.5} parent=31 // loop_pre_header
          _
        $region34: #{_encoder_forward.5} parent=31 // loop_header
          %s291 = sphi 0, %s295
          %p292 = scmp.ge.s32.totalorder %s291, 8
        $region35: #{_encoder_forward.5} parent=31 // loop_header_branch
          %294 = sbr.rel (%p292) target = $region39
        $region36: #{_encoder_forward.5} parent=31 // loop_body
          %s296 = smul.u32 %s23, 7
          %s297 = smul.u32 %s23, 2
          %s298 = ssub.s32 1, %s297
          %s299 = smul.u32 %s298, %s291
          %s300 = sadd.s32 %s296, %s299
          %s301 = smul.u32 %s300, 8
          %s302 = scalar_lea.vmem %s259, %s301
          %v303 = vld [vmem:[%s302] sm:$0xff]
          %v304 = vld [vmem:[#allocation2] sm:$0xff]
          %v305 = vpack.c.bf16 %v304, %v304
          %v310 = vunpack.c.l.b16 %v279
          %v311 = vunpack.c.l.b16 %v280
          %v312 = vunpack.c.l.b16 %v281
          %v313 = vunpack.c.l.b16 %v282
          %v314 = vpack.c.b16 %v311, %v310
          %v315 = vpack.c.b16 %v313, %v312
          %v319 = vsel %vm277, %v305, 0
          %321 = vmatprep.subr.bf16.mxu0 0
          %322 = vmatpush1.bf16.msra.mxu0 %v314
          %323 = vmatprep.subr.bf16.mxu0 0
          %324 = vmatpush1.bf16.msra.mxu0 %v315
          %325 = vmatprep.subr.bf16.mxu0 0
          %326 = vmatpush1.bf16.msra.mxu0 0
          %327 = vmatprep.subr.bf16.mxu0 0
          %328 = vmatpush1.bf16.msra.mxu0 0
          %329 = vmatprep.subr.bf16.mxu0 0
          %330 = vmatpush1.bf16.msra.mxu0 0
          %331 = vmatprep.subr.bf16.mxu0 0
          %332 = vmatpush1.bf16.msra.mxu0 0
          %333 = vmatprep.subr.bf16.mxu0 0
          %334 = vmatpush1.bf16.msra.mxu0 0
          %335 = vmatprep.subr.bf16.mxu0 0
          %336 = vmatpush1.bf16.msra.mxu0 0
          %337 = vmatprep.subr.bf16.mxu0 0
          %338 = vmatpush1.bf16.msra.mxu0 0
          %339 = vmatprep.subr.bf16.mxu0 0
          %340 = vmatpush1.bf16.msra.mxu0 0
          %341 = vmatprep.subr.bf16.mxu0 0
          %342 = vmatpush1.bf16.msra.mxu0 0
          %343 = vmatprep.subr.bf16.mxu0 0
          %344 = vmatpush1.bf16.msra.mxu0 0
          %345 = vmatprep.subr.bf16.mxu0 0
          %346 = vmatpush1.bf16.msra.mxu0 0
          %347 = vmatprep.subr.bf16.mxu0 0
          %348 = vmatpush1.bf16.msra.mxu0 0
          %349 = vmatprep.subr.bf16.mxu0 0
          %350 = vmatpush1.bf16.msra.mxu0 0
          %351 = vmatprep.subr.bf16.mxu0 0
          %352 = vmatpush1.bf16.msra.mxu0 0
          %353 = vmatprep.mubr.bf16.mxu0 0
          %354 = vmatmul.mubr.bf16.gmra.mrb[0].mxu0 %v319
          %v355 = vpop.f32.mrb[0].mxu0
          %v356 = vadd.f32 %v288, %v355
          %v357 = vpop.f32.mrb[0].mxu0
          %v358 = vpop.f32.mrb[0].mxu0
          %v359 = vpop.f32.mrb[0].mxu0
          %360 = vdwg.mxu0
          %v361 = vadd.f32 %v303, %v356
          %v362 = vxor.u32 %v361, 2147483648
          %v363 = vmul.f32 %v362, 1.442695
          %v364 = vpow.pop %v363
          %v365 = vadd.f32 %v364, 1.0
          %v366 = vrcp.pop %v365
          %v367 = vmul.f32 1.0, %v366
          %369 = vrot.lane.b32.xlu0 %v356, 64
          %v370 = vpop.permute.xlu0 %369
          %v372 = vmul.f32 %v367, %v370
          %374 = vrot.lane.b32.xlu0 %v372, 64
          %v375 = vpop.permute.xlu0 %374
          %v377 = vadd.f32 %v303, %v375
          %v378 = vtanh.pop %v377
          %v379 = vsub.f32 1.0, %v367
          %381 = vrot.lane.b32.xlu0 %v378, 96
          %v382 = vpop.permute.xlu0 %381
          %v384 = vmul.f32 %v379, %v382
          %386 = vrot.lane.b32.xlu0 %v304, 32
          %v387 = vpop.permute.xlu0 %386
          %v389 = vmul.f32 %v367, %v387
          %v390 = vadd.f32 %v384, %v389
          %392 = vrot.lane.b32.xlu0 %v390, 96
          %v393 = vpop.permute.xlu0 %392
          %395 = vst.msk [vmem:[#allocation2] sm:$0xff] %vm277, %v393
          %v396 = vpack.c.bf16 %v390, %v390
          %v398 = vunpack.c.l.b16 %v396
          %v399 = vpack.c.b16 %v398, %v398
          %400 = vrot.lane.b32.xlu0 %v399, 96
          %v401 = vpop.permute.xlu0 %400
          %s403 = smul.addr %s300, 4
          %s404 = scalar_lea.vmem %s275, %s403
          %vm405 = vcmask 257024
          %406 = vst.msk [vmem:[%s404] sm:$0xf] %vm405, %v401
        $region37: #{_encoder_forward.5} parent=31 // loop_footer
          %s295 = sadd.s32 1, %s291
        $region38: #{_encoder_forward.5} parent=31 // loop_footer_branch
          %290 = sbr.rel target = $region34
        $region39: #{_encoder_forward.5} parent=31 // loop_exit
          _
        %v407 = vld [vmem:[#allocation2] sm:$0xff]
        %408 = vst.msk [vmem:[%s251] sm:$0xff] %vm277, %v407
        %p409 = scmp.lt.s32.totalorder %s23, 1
        %s410 = scalar_select %p409, %s23, 1
        %p411 = scmp.lt.s32.totalorder %s24, 0
        %s412 = scalar_select %p411, %s24, 0
        %s413 = smul.addr %s410, 8
        %s414 = sadd.s32 %s412, %s413
        %s415 = smul.addr %s414, 4
        %s416 = scalar_lea.vmem %s3, %s415
        %s417 = sand.u32 %s149, 1
        %s418 = scalar_lea.sflag [#allocation4], %s417
        %s419 = sand.u32 %s149, 1
        %s420 = smul.addr %s419, 8
        %s421 = scalar_lea.vmem [#allocation3], %s420
        // Predicated region
        $region40: #{_encoder_forward.5} parent=31 // pred_check
          %p422 = pneg %p131
        $region41: #{_encoder_forward.5} parent=31 // pred_check_branch
          %424 = sbr.rel (%p422) target = $region43
        $region42: #{_encoder_forward.5} parent=31 // pred_region
          _
        $region43: #{_encoder_forward.5} parent=31 // pred_fallthru
          _
        // Predicated region
        $region44: #{_encoder_forward.5} parent=31 // pred_check
          %p425 = pneg %p159
        $region45: #{_encoder_forward.5} parent=31 // pred_check_branch
          %427 = sbr.rel (%p425) target = $region47
        $region46: #{_encoder_forward.5} parent=31 // pred_region
          %s429 = ssub.s32 128, 128
          %430 = vsyncadd %s418, %s429
          %s431 = sadd.s32 %s24, %s23
          %s432 = smul.addr %s431, 128
          %s433 = scalar_lea.hbm %s4, %s432
          %s435 = sshll.u32 %s421, 4
          %s436 = int_to_ptr.vmem [resolvable:$true] %s435
          %438 = dma.vmem_to_hbm [thread:$0]  %s436, 128, %s433, %s418
        $region47: #{_encoder_forward.5} parent=31 // pred_fallthru
          _
      $region32: #{_encoder_forward.5} parent=5 // pred_fallthru
        _
      %p439 = scmp.le.s32.totalorder 2, %s14
      // Predicated region
      $region48: #{_encoder_forward.5} parent=5 // pred_check
        %p440 = pneg %p439
      $region49: #{_encoder_forward.5} parent=5 // pred_check_branch
        %442 = sbr.rel (%p440) target = $region51
      $region50: #{_encoder_forward.5} parent=5 // pred_region
        %s443 = ssub.s32 %s14, 2
        // Predicated region
        $region52: #{_encoder_forward.5} parent=50 // pred_check
          %p444 = pneg %p137
        $region53: #{_encoder_forward.5} parent=50 // pred_check_branch
          %446 = sbr.rel (%p444) target = $region55
        $region54: #{_encoder_forward.5} parent=50 // pred_region
          %p447 = scmp.lt.s32.totalorder %s25, 1
          %s448 = scalar_select %p447, %s25, 1
          %p449 = scmp.lt.s32.totalorder %s26, 0
          %s450 = scalar_select %p449, %s26, 0
          %s451 = smul.addr %s448, 8
          %s452 = sadd.s32 %s450, %s451
          %s453 = smul.addr %s452, 4
          %s454 = scalar_lea.vmem %s3, %s453
        $region55: #{_encoder_forward.5} parent=50 // pred_fallthru
          _
        // Predicated region
        $region56: #{_encoder_forward.5} parent=50 // pred_check
          %p455 = pneg %p165
        $region57: #{_encoder_forward.5} parent=50 // pred_check_branch
          %457 = sbr.rel (%p455) target = $region59
        $region58: #{_encoder_forward.5} parent=50 // pred_region
          %s458 = sand.u32 %s150, 1
          %s459 = scalar_lea.sflag [#allocation4], %s458
          %s460 = sand.u32 %s150, 1
          %s461 = smul.addr %s460, 8
          %s462 = scalar_lea.vmem [#allocation3], %s461
          %463 = dma.done %s459, 128
        $region59: #{_encoder_forward.5} parent=50 // pred_fallthru
          _
      $region51: #{_encoder_forward.5} parent=5 // pred_fallthru
        _
    $region6: #{_encoder_forward.5} parent=1 // loop_footer
      %s18 = sadd.s32 1, %s14
    $region7: #{_encoder_forward.5} parent=1 // loop_footer_branch
      %13 = sbr.rel target = $region3
    $region8: #{_encoder_forward.5} parent=1 // loop_exit
      _
    %464 = vsyncpa [#allocation4], 1
    %s465 = scalar_lea.sflag [#allocation4], 1
    %466 = vsyncpa %s465, 1

</llo_original>
